<compile_context>
chip_gen: v5e
topology: v5e:2x2
jax: 0.10.0
libtpu: 0.0.40
codegen_flags: <defaults>
</compile_context>

<pallas_src>
import jax
import jax.numpy as jnp
from jax import lax
from jax.experimental import pallas as pl
from jax.experimental.pallas import tpu as pltpu


# ----------------------------- Pallas kernel -----------------------------

def _disc_kernel(img_ref, emb_ref, len_ref,
                 wimg_ref, bimg_ref,
                 wih_ref, bg_ref, whh_ref,
                 w1i_ref, w1h_ref, b1_ref,
                 w2_ref, b2_ref,
                 out_ref, gx_ref):
    Bb = img_ref.shape[0]          # batch block (sublane multiple of 8)
    H = whh_ref.shape[0]
    T = emb_ref.shape[0] // Bb
    f32 = jnp.float32
    mxu = wih_ref.dtype            # MXU operand dtype (f32 or bf16); accumulation is always f32

    def mm(a, b):
        return jnp.dot(a, b, preferred_element_type=f32)

    # ---- image branch: tanh(img @ W_img + b_img) ----
    img_h = jnp.tanh(mm(img_ref[...].astype(mxu), wimg_ref[...]) + bimg_ref[...])

    # ---- hoisted LSTM input projection: one big matmul over the whole sequence ----
    # gates_x[t*Bb + b, :] = x_{t,b} @ W_ih + (b_ih + b_hh)   (biases folded here, not per step)
    gx_ref[...] = mm(emb_ref[...], wih_ref[...]) + bg_ref[...]

    seq_len = len_ref[...]         # [Bb, 1] int32
    w_hh = whh_ref[...]            # [H, 4H]

    h0 = jnp.zeros((Bb, H), f32)
    c0 = jnp.zeros((Bb, H), f32)

    def step(t, carry):
        h, c = carry
        base = pl.multiple_of(t * Bb, Bb)          # Bb is a sublane multiple -> aligned VMEM read
        gates = gx_ref[pl.ds(base, Bb), :] + mm(h.astype(mxu), w_hh)   # [Bb, 4H], order i,f,g,o
        # Full-slab nonlinearities (EUP at 100% lane utilization), then cheap VPU slices.
        sig = jax.nn.sigmoid(gates)
        tnh = jnp.tanh(gates)
        i_g = sig[:, 0 * H:1 * H]
        f_g = sig[:, 1 * H:2 * H]
        g_g = tnh[:, 2 * H:3 * H]
        o_g = sig[:, 3 * H:4 * H]
        c_new = f_g * c + i_g * g_g
        h_new = o_g * jnp.tanh(c_new)
        # packed-sequence semantics: freeze (h, c) once t >= seq_len[b]
        keep = t < seq_len                          # [Bb, 1] bool
        return jnp.where(keep, h_new, h), jnp.where(keep, c_new, c)

    h, _ = lax.fori_loop(0, T, step, (h0, c0), unroll=min(T, 8))

    h = jnp.tanh(h)
    # concat([img_h, h]) @ W1 == img_h @ W1_img + h @ W1_h  (no lane-axis concat)
    hidden = jnp.tanh(mm(img_h.astype(mxu), w1i_ref[...])
                      + mm(h.astype(mxu), w1h_ref[...])
                      + b1_ref[...])
    out_ref[...] = mm(hidden.astype(mxu), w2_ref[...]) + b2_ref[...]


# ----------------------------- One-time parameter prep -----------------------------

def prepare_params(params, mxu_dtype=jnp.float32):
    """Hoisted out of the per-call wrapper: bias sum, W1 split, lane-dense W2/b2, MXU dtype cast."""
    H = params["w_hh"].shape[0]
    out_cols = params["w2"].shape[1]
    LANE = 128
    o_pad = max(LANE, pl.cdiv(out_cols, LANE) * LANE)
    f32 = jnp.float32
    return {
        "embedding_m": params["embedding"].astype(mxu_dtype),
        "w_img_m": params["w_img"].astype(mxu_dtype),
        "b_img": params["b_img"].astype(f32),
        "w_ih_m": params["w_ih"].astype(mxu_dtype),
        "bias_g": (params["b_ih"] + params["b_hh"]).astype(f32),     # pre-summed LSTM biases
        "w_hh_m": params["w_hh"].astype(mxu_dtype),
        "w1_img_m": params["w1"][:H, :].astype(mxu_dtype),           # split linear1 -> no concat
        "w1_h_m": params["w1"][H:, :].astype(mxu_dtype),
        "b1": params["b1"].astype(f32),
        "w2_pad": jnp.pad(params["w2"], ((0, 0), (0, o_pad - out_cols))).astype(mxu_dtype),
        "b2_pad": jnp.pad(params["b2"], ((0, 0), (0, o_pad - out_cols))).astype(f32),
        "out_cols": out_cols,                                        # plain Python int
    }


# ----------------------------- Wrapper -----------------------------

def discriminator_forward(pp, img_feature, sentence, sen_seq_len, *, b_blk=8):
    """img_feature: [B, image_hidden] f32, sentence: [B, T] int32, sen_seq_len: [B] or [B,1]."""
    B, T = sentence.shape
    E = pp["w_ih_m"].shape[0]
    H = pp["w_hh_m"].shape[0]
    IMG = pp["w_img_m"].shape[0]
    if sen_seq_len.ndim == 2:
        sen_seq_len = sen_seq_len.reshape(B)

    assert b_blk % 8 == 0
    B_pad = pl.cdiv(B, b_blk) * b_blk
    n_blk = B_pad // b_blk
    O_pad = pp["w2_pad"].shape[1]
    out_cols = pp["out_cols"]

    # Layout plumbing (pad / transpose / block-split) stays on the tiny int32 id array; the only
    # activation-sized HBM pass outside the kernel is this single gather.
    ids = jnp.pad(sentence.astype(jnp.int32), ((0, B_pad - B), (0, 0)))          # [B_pad, T]
    ids = ids.T.reshape(T, n_blk, b_blk).transpose(1, 0, 2).reshape(n_blk, T * b_blk)
    emb = pp["embedding_m"][ids]                                                  # [n_blk, T*b_blk, E]
    # TODO(synk): at realistic vocab/T, gather embedding rows in-kernel (scalar-prefetched ids +
    # manual DMA from the HBM table) instead of materializing [T*B, E] in HBM.

    img_p = jnp.pad(img_feature.astype(jnp.float32), ((0, B_pad - B), (0, 0)))   # [B_pad, IMG]
    seq_len = jnp.pad(sen_seq_len.astype(jnp.int32), (0, B_pad - B)).reshape(B_pad, 1)

    rep2 = lambda shape: pl.BlockSpec(shape, lambda b: (0, 0))                    # replicated weight
    in_specs = [
        pl.BlockSpec((b_blk, IMG), lambda b: (b, 0)),                # img
        pl.BlockSpec((None, T * b_blk, E), lambda b: (b, 0, 0)),     # emb (per-block, time-major)
        pl.BlockSpec((b_blk, 1), lambda b: (b, 0)),                  # seq_len
        rep2((IMG, H)), rep2((1, H)),                                # W_img, b_img
        rep2((E, 4 * H)), rep2((1, 4 * H)), rep2((H, 4 * H)),        # W_ih, bias_g, W_hh
        rep2((H, H)), rep2((H, H)), rep2((1, H)),                    # W1_img, W1_h, b1
        rep2((H, O_pad)), rep2((1, O_pad)),                          # W2 (lane-padded), b2
    ]
    out = pl.pallas_call(
        _disc_kernel,
        out_shape=jax.ShapeDtypeStruct((B_pad, O_pad), jnp.float32),
        grid_spec=pltpu.PrefetchScalarGridSpec(
            num_scalar_prefetch=0,
            grid=(n_blk,),
            in_specs=in_specs,
            out_specs=pl.BlockSpec((b_blk, O_pad), lambda b: (b, 0)),
            # TODO(synk): at realistic T, stream gx/emb over a T-chunk grid axis so this scratch
            # stays bounded on v7x's 64 MiB VMEM.
            scratch_shapes=[pltpu.VMEM((T * b_blk, 4 * H), jnp.float32)],
        ),
        compiler_params=pltpu.CompilerParams(
            dimension_semantics=("parallel",),          # v7x: batch blocks split across both TCs
            vmem_limit_bytes=32 * 1024 * 1024,
        ),
    )(
        img_p, emb, seq_len,
        pp["w_img_m"], pp["b_img"],
        pp["w_ih_m"], pp["bias_g"], pp["w_hh_m"],
        pp["w1_img_m"], pp["w1_h_m"], pp["b1"],
        pp["w2_pad"], pp["b2_pad"],
    )
    return out[:B, :out_cols]


# ----------------------------- Parameter init -----------------------------

def init_params(key, vocab_size, embed_size, d_hidden, image_hidden, pad_idx):
    ks = jax.random.split(key, 12)
    s = 0.1
    emb = s * jax.random.normal(ks[0], (vocab_size, embed_size), jnp.float32)
    emb = emb.at[pad_idx].set(0.0)  # padding_idx row is zero
    return {
        "embedding": emb,
        # img_to_embed: Linear(image_hidden -> H); stored as [in, out]
        "w_img": s * jax.random.normal(ks[1], (image_hidden, d_hidden), jnp.float32),
        "b_img": s * jax.random.normal(ks[2], (1, d_hidden), jnp.float32),
        # LSTM (single layer): W_ih [E, 4H], W_hh [H, 4H], gate order i,f,g,o
        "w_ih": s * jax.random.normal(ks[3], (embed_size, 4 * d_hidden), jnp.float32),
        "b_ih": s * jax.random.normal(ks[4], (1, 4 * d_hidden), jnp.float32),
        "w_hh": s * jax.random.normal(ks[5], (d_hidden, 4 * d_hidden), jnp.float32),
        "b_hh": s * jax.random.normal(ks[6], (1, 4 * d_hidden), jnp.float32),
        # linear1: [2H -> H], linear2: [H -> 3]
        "w1": s * jax.random.normal(ks[7], (2 * d_hidden, d_hidden), jnp.float32),
        "b1": s * jax.random.normal(ks[8], (1, d_hidden), jnp.float32),
        "w2": s * jax.random.normal(ks[9], (d_hidden, 3), jnp.float32),
        "b2": s * jax.random.normal(ks[10], (1, 3), jnp.float32),
    }


# ----------------------------- Pure-JAX reference -----------------------------

def reference_forward(params, img_feature, sentence, sen_seq_len):
    B = img_feature.shape[0]
    H = params["w_hh"].shape[0]
    T = sentence.shape[1]
    img_h = jnp.tanh(img_feature @ params["w_img"] + params["b_img"])
    emb = params["embedding"][sentence]  # [B, T, E]
    h = jnp.zeros((B, H), jnp.float32)
    c = jnp.zeros((B, H), jnp.float32)
    for t in range(T):
        x_t = emb[:, t, :]
        gates = x_t @ params["w_ih"] + params["b_ih"] + h @ params["w_hh"] + params["b_hh"]
        i_g = jax.nn.sigmoid(gates[:, 0 * H:1 * H])
        f_g = jax.nn.sigmoid(gates[:, 1 * H:2 * H])
        g_g = jnp.tanh(gates[:, 2 * H:3 * H])
        o_g = jax.nn.sigmoid(gates[:, 3 * H:4 * H])
        c_new = f_g * c + i_g * g_g
        h_new = o_g * jnp.tanh(c_new)
        mask = (t < sen_seq_len.reshape(B, 1)).astype(jnp.float32)
        h = mask * h_new + (1.0 - mask) * h
        c = mask * c_new + (1.0 - mask) * c
    h = jnp.tanh(h)
    concat = jnp.concatenate([img_h, h], axis=-1)
    hidden = jnp.tanh(concat @ params["w1"] + params["b1"])
    return hidden @ params["w2"] + params["b2"]


# ----------------------------- Main -----------------------------

if __name__ == "__main__":
    VOCAB = 32
    EMBED = 16
    D_HIDDEN = 32
    IMAGE_HIDDEN = 32
    PAD_IDX = 0
    B, T = 2, 8

    key = jax.random.PRNGKey(0)
    k_p, k_img, k_sent = jax.random.split(key, 3)

    params = init_params(k_p, VOCAB, EMBED, D_HIDDEN, IMAGE_HIDDEN, PAD_IDX)

    img_feature = jax.random.normal(k_img, (B, IMAGE_HIDDEN), jnp.float32)
    sentence = jax.random.randint(k_sent, (B, T), 1, VOCAB).astype(jnp.int32)
    sen_seq_len = jnp.array([8, 5], dtype=jnp.int32)
    # pad positions beyond each sequence's length with pad_idx (as a dataloader would)
    t_idx = jnp.arange(T)[None, :]
    sentence = jnp.where(t_idx < sen_seq_len[:, None], sentence, PAD_IDX)

    ref = reference_forward(params, img_feature, sentence, sen_seq_len)

    # f32 MXU path: bit-for-bit-ish vs. the f32 reference (1e-5 tolerance).
    pp_f32 = prepare_params(params, mxu_dtype=jnp.float32)
    out_f32 = jax.block_until_ready(
        discriminator_forward(pp_f32, img_feature, sentence, sen_seq_len))
    assert out_f32.shape == (B, 3)
    assert jnp.allclose(out_f32, ref, atol=1e-5, rtol=1e-5), (out_f32, ref)

    # bf16 MXU-operand path (f32 accumulation, f32 carries/nonlinearities): loosened tolerance.
    pp_bf16 = prepare_params(params, mxu_dtype=jnp.bfloat16)
    out_bf16 = jax.block_until_ready(
        discriminator_forward(pp_bf16, img_feature, sentence, sen_seq_len))
    assert out_bf16.shape == (B, 3)
    assert jnp.allclose(out_bf16, ref, atol=5e-2, rtol=5e-2), (out_bf16, ref)

    print("KERNEL_OK")
</pallas_src>

<mosaic_0001>
module attributes {stable_mosaic.version = 11 : i64} {
  func.func @_disc_kernel(%arg0: i32, %arg1: memref<8x32xf32, #tpu.memory_space<vmem>>, %arg2: memref<1x64x16xf32, #tpu.memory_space<vmem>>, %arg3: memref<8x1xi32, #tpu.memory_space<vmem>>, %arg4: memref<32x32xf32, #tpu.memory_space<vmem>>, %arg5: memref<1x32xf32, #tpu.memory_space<vmem>>, %arg6: memref<16x128xf32, #tpu.memory_space<vmem>>, %arg7: memref<1x128xf32, #tpu.memory_space<vmem>>, %arg8: memref<32x128xf32, #tpu.memory_space<vmem>>, %arg9: memref<32x32xf32, #tpu.memory_space<vmem>>, %arg10: memref<32x32xf32, #tpu.memory_space<vmem>>, %arg11: memref<1x32xf32, #tpu.memory_space<vmem>>, %arg12: memref<32x128xf32, #tpu.memory_space<vmem>>, %arg13: memref<1x128xf32, #tpu.memory_space<vmem>>, %arg14: memref<8x128xf32, #tpu.memory_space<vmem>>, %arg15: memref<64x128xf32, #tpu.memory_space<vmem>>) attributes {dimension_semantics = [#tpu.dimension_semantics<parallel>], iteration_bounds = array<i64: 1>, scalar_prefetch = 0 : i64, scratch_operands = 1 : i64, tpu.core_type = #tpu.core_type<tc>, window_params = [{transform_indices = @transform_0, window_bounds = array<i64: 8, 32>}, {transform_indices = @transform_1, window_bounds = array<i64: 1, 64, 16>}, {transform_indices = @transform_2, window_bounds = array<i64: 8, 1>}, {pipeline_mode = #tpu.pipeline_mode<synchronous>, transform_indices = @transform_3, window_bounds = array<i64: 32, 32>}, {pipeline_mode = #tpu.pipeline_mode<synchronous>, transform_indices = @transform_4, window_bounds = array<i64: 1, 32>}, {pipeline_mode = #tpu.pipeline_mode<synchronous>, transform_indices = @transform_5, window_bounds = array<i64: 16, 128>}, {pipeline_mode = #tpu.pipeline_mode<synchronous>, transform_indices = @transform_6, window_bounds = array<i64: 1, 128>}, {pipeline_mode = #tpu.pipeline_mode<synchronous>, transform_indices = @transform_7, window_bounds = array<i64: 32, 128>}, {pipeline_mode = #tpu.pipeline_mode<synchronous>, transform_indices = @transform_8, window_bounds = array<i64: 32, 32>}, {pipeline_mode = #tpu.pipeline_mode<synchronous>, transform_indices = @transform_9, window_bounds = array<i64: 32, 32>}, {pipeline_mode = #tpu.pipeline_mode<synchronous>, transform_indices = @transform_10, window_bounds = array<i64: 1, 32>}, {pipeline_mode = #tpu.pipeline_mode<synchronous>, transform_indices = @transform_11, window_bounds = array<i64: 32, 128>}, {pipeline_mode = #tpu.pipeline_mode<synchronous>, transform_indices = @transform_12, window_bounds = array<i64: 1, 128>}, {transform_indices = @transform_13, window_bounds = array<i64: 8, 128>}]} {
    %c0 = arith.constant 0 : index
    %c0_0 = arith.constant 0 : index
    %0 = vector.load %arg1[%c0, %c0_0] : memref<8x32xf32, #tpu.memory_space<vmem>>, vector<8x32xf32>
    %c0_1 = arith.constant 0 : index
    %c0_2 = arith.constant 0 : index
    %1 = vector.load %arg4[%c0_1, %c0_2] : memref<32x32xf32, #tpu.memory_space<vmem>>, vector<32x32xf32>
    %cst = arith.constant dense<0.000000e+00> : vector<8x32xf32>
    %2 = tpu.matmul %0, %1, %cst {dimension_numbers = #tpu.dot_dimension_numbers<[1], [0], [0], [1], [0, 0, 1, 1], [], []>} : vector<8x32xf32>, vector<32x32xf32>, vector<8x32xf32> -> vector<8x32xf32>
    %c0_3 = arith.constant 0 : index
    %c0_4 = arith.constant 0 : index
    %3 = vector.load %arg5[%c0_3, %c0_4] : memref<1x32xf32, #tpu.memory_space<vmem>>, vector<1x32xf32>
    %4 = vector.broadcast %3 : vector<1x32xf32> to vector<8x32xf32>
    %5 = arith.addf %2, %4 : vector<8x32xf32>
    %6 = math.tanh %5 : vector<8x32xf32>
    %c0_5 = arith.constant 0 : index
    %c0_6 = arith.constant 0 : index
    %c0_7 = arith.constant 0 : index
    %7 = vector.load %arg2[%c0_5, %c0_6, %c0_7] : memref<1x64x16xf32, #tpu.memory_space<vmem>>, vector<1x64x16xf32>
    %8 = vector.shape_cast %7 : vector<1x64x16xf32> to vector<64x16xf32>
    %c0_8 = arith.constant 0 : index
    %c0_9 = arith.constant 0 : index
    %9 = vector.load %arg6[%c0_8, %c0_9] : memref<16x128xf32, #tpu.memory_space<vmem>>, vector<16x128xf32>
    %cst_10 = arith.constant dense<0.000000e+00> : vector<64x128xf32>
    %10 = tpu.matmul %8, %9, %cst_10 {dimension_numbers = #tpu.dot_dimension_numbers<[1], [0], [0], [1], [0, 0, 1, 1], [], []>} : vector<64x16xf32>, vector<16x128xf32>, vector<64x128xf32> -> vector<64x128xf32>
    %c0_11 = arith.constant 0 : index
    %c0_12 = arith.constant 0 : index
    %11 = vector.load %arg7[%c0_11, %c0_12] : memref<1x128xf32, #tpu.memory_space<vmem>>, vector<1x128xf32>
    %12 = vector.broadcast %11 : vector<1x128xf32> to vector<64x128xf32>
    %13 = arith.addf %10, %12 : vector<64x128xf32>
    %c0_13 = arith.constant 0 : index
    %c0_14 = arith.constant 0 : index
    %14 = vector.load %arg15[%c0_13, %c0_14] : memref<64x128xf32, #tpu.memory_space<vmem>>, vector<64x128xf32>
    tpu.vector_store %arg15[%c0_13, %c0_14], %13 {strides = array<i32>} : memref<64x128xf32, #tpu.memory_space<vmem>>, vector<64x128xf32>,
    %c0_15 = arith.constant 0 : index
    %c0_16 = arith.constant 0 : index
    %15 = vector.load %arg3[%c0_15, %c0_16] : memref<8x1xi32, #tpu.memory_space<vmem>>, vector<8x1xi32>
    %c0_17 = arith.constant 0 : index
    %c0_18 = arith.constant 0 : index
    %16 = vector.load %arg8[%c0_17, %c0_18] : memref<32x128xf32, #tpu.memory_space<vmem>>, vector<32x128xf32>
    %cst_19 = arith.constant 0.000000e+00 : f32
    %17 = vector.broadcast %cst_19 : f32 to vector<8x32xf32>
    %cst_20 = arith.constant 0.000000e+00 : f32
    %18 = vector.broadcast %cst_20 : f32 to vector<8x32xf32>
    %c0_i32 = arith.constant 0 : i32
    %c8_i32 = arith.constant 8 : i32
    %19 = arith.muli %c0_i32, %c8_i32 : i32
    %20 = tpu.assume_multiple %19, 8 : i32
    %21 = arith.index_cast %20 : i32 to index
    %c0_21 = arith.constant 0 : index
    %22 = vector.load %arg15[%21, %c0_21] : memref<64x128xf32, #tpu.memory_space<vmem>>, vector<8x128xf32>
    %cst_22 = arith.constant dense<0.000000e+00> : vector<8x128xf32>
    %23 = tpu.matmul %17, %16, %cst_22 {dimension_numbers = #tpu.dot_dimension_numbers<[1], [0], [0], [1], [0, 0, 1, 1], [], []>} : vector<8x32xf32>, vector<32x128xf32>, vector<8x128xf32> -> vector<8x128xf32>
    %24 = arith.addf %22, %23 : vector<8x128xf32>
    %25 = arith.negf %24 : vector<8x128xf32>
    %26 = math.exp %25 : vector<8x128xf32>
    %cst_23 = arith.constant 1.000000e+00 : f32
    %27 = vector.broadcast %cst_23 : f32 to vector<8x128xf32>
    %28 = arith.addf %27, %26 : vector<8x128xf32>
    %29 = arith.divf %27, %28 : vector<8x128xf32>
    %30 = math.tanh %24 : vector<8x128xf32>
    %31 = vector.extract_strided_slice %29 {offsets = [0, 0], sizes = [8, 32], strides = [1, 1]} : vector<8x128xf32> to vector<8x32xf32>
    %32 = vector.extract_strided_slice %29 {offsets = [0, 32], sizes = [8, 32], strides = [1, 1]} : vector<8x128xf32> to vector<8x32xf32>
    %33 = vector.extract_strided_slice %30 {offsets = [0, 64], sizes = [8, 32], strides = [1, 1]} : vector<8x128xf32> to vector<8x32xf32>
    %34 = vector.extract_strided_slice %29 {offsets = [0, 96], sizes = [8, 32], strides = [1, 1]} : vector<8x128xf32> to vector<8x32xf32>
    %35 = arith.mulf %32, %18 : vector<8x32xf32>
    %36 = arith.mulf %31, %33 : vector<8x32xf32>
    %37 = arith.addf %35, %36 : vector<8x32xf32>
    %38 = math.tanh %37 : vector<8x32xf32>
    %39 = arith.mulf %34, %38 : vector<8x32xf32>
    %40 = vector.broadcast %c0_i32 : i32 to vector<8x1xi32>
    %41 = arith.cmpi slt, %40, %15 : vector<8x1xi32>
    %42 = vector.shape_cast %41 : vector<8x1xi1> to vector<8x1xi1>
    %43 = vector.broadcast %42 : vector<8x1xi1> to vector<8x32xi1>
    %44 = arith.select %43, %39, %17 : vector<8x32xi1>, vector<8x32xf32>
    %45 = vector.shape_cast %41 : vector<8x1xi1> to vector<8x1xi1>
    %46 = vector.broadcast %45 : vector<8x1xi1> to vector<8x32xi1>
    %47 = arith.select %46, %37, %18 : vector<8x32xi1>, vector<8x32xf32>
    %c1_i32 = arith.constant 1 : i32
    %c8_i32_24 = arith.constant 8 : i32
    %48 = arith.muli %c1_i32, %c8_i32_24 : i32
    %49 = tpu.assume_multiple %48, 8 : i32
    %50 = arith.index_cast %49 : i32 to index
    %c0_25 = arith.constant 0 : index
    %51 = vector.load %arg15[%50, %c0_25] : memref<64x128xf32, #tpu.memory_space<vmem>>, vector<8x128xf32>
    %cst_26 = arith.constant dense<0.000000e+00> : vector<8x128xf32>
    %52 = tpu.matmul %44, %16, %cst_26 {dimension_numbers = #tpu.dot_dimension_numbers<[1], [0], [0], [1], [0, 0, 1, 1], [], []>} : vector<8x32xf32>, vector<32x128xf32>, vector<8x128xf32> -> vector<8x128xf32>
    %53 = arith.addf %51, %52 : vector<8x128xf32>
    %54 = arith.negf %53 : vector<8x128xf32>
    %55 = math.exp %54 : vector<8x128xf32>
    %cst_27 = arith.constant 1.000000e+00 : f32
    %56 = vector.broadcast %cst_27 : f32 to vector<8x128xf32>
    %57 = arith.addf %56, %55 : vector<8x128xf32>
    %58 = arith.divf %56, %57 : vector<8x128xf32>
    %59 = math.tanh %53 : vector<8x128xf32>
    %60 = vector.extract_strided_slice %58 {offsets = [0, 0], sizes = [8, 32], strides = [1, 1]} : vector<8x128xf32> to vector<8x32xf32>
    %61 = vector.extract_strided_slice %58 {offsets = [0, 32], sizes = [8, 32], strides = [1, 1]} : vector<8x128xf32> to vector<8x32xf32>
    %62 = vector.extract_strided_slice %59 {offsets = [0, 64], sizes = [8, 32], strides = [1, 1]} : vector<8x128xf32> to vector<8x32xf32>
    %63 = vector.extract_strided_slice %58 {offsets = [0, 96], sizes = [8, 32], strides = [1, 1]} : vector<8x128xf32> to vector<8x32xf32>
    %64 = arith.mulf %61, %47 : vector<8x32xf32>
    %65 = arith.mulf %60, %62 : vector<8x32xf32>
    %66 = arith.addf %64, %65 : vector<8x32xf32>
    %67 = math.tanh %66 : vector<8x32xf32>
    %68 = arith.mulf %63, %67 : vector<8x32xf32>
    %69 = vector.broadcast %c1_i32 : i32 to vector<8x1xi32>
    %70 = arith.cmpi slt, %69, %15 : vector<8x1xi32>
    %71 = vector.shape_cast %70 : vector<8x1xi1> to vector<8x1xi1>
    %72 = vector.broadcast %71 : vector<8x1xi1> to vector<8x32xi1>
    %73 = arith.select %72, %68, %44 : vector<8x32xi1>, vector<8x32xf32>
    %74 = vector.shape_cast %70 : vector<8x1xi1> to vector<8x1xi1>
    %75 = vector.broadcast %74 : vector<8x1xi1> to vector<8x32xi1>
    %76 = arith.select %75, %66, %47 : vector<8x32xi1>, vector<8x32xf32>
    %c2_i32 = arith.constant 2 : i32
    %c8_i32_28 = arith.constant 8 : i32
    %77 = arith.muli %c2_i32, %c8_i32_28 : i32
    %78 = tpu.assume_multiple %77, 8 : i32
    %79 = arith.index_cast %78 : i32 to index
    %c0_29 = arith.constant 0 : index
    %80 = vector.load %arg15[%79, %c0_29] : memref<64x128xf32, #tpu.memory_space<vmem>>, vector<8x128xf32>
    %cst_30 = arith.constant dense<0.000000e+00> : vector<8x128xf32>
    %81 = tpu.matmul %73, %16, %cst_30 {dimension_numbers = #tpu.dot_dimension_numbers<[1], [0], [0], [1], [0, 0, 1, 1], [], []>} : vector<8x32xf32>, vector<32x128xf32>, vector<8x128xf32> -> vector<8x128xf32>
    %82 = arith.addf %80, %81 : vector<8x128xf32>
    %83 = arith.negf %82 : vector<8x128xf32>
    %84 = math.exp %83 : vector<8x128xf32>
    %cst_31 = arith.constant 1.000000e+00 : f32
    %85 = vector.broadcast %cst_31 : f32 to vector<8x128xf32>
    %86 = arith.addf %85, %84 : vector<8x128xf32>
    %87 = arith.divf %85, %86 : vector<8x128xf32>
    %88 = math.tanh %82 : vector<8x128xf32>
    %89 = vector.extract_strided_slice %87 {offsets = [0, 0], sizes = [8, 32], strides = [1, 1]} : vector<8x128xf32> to vector<8x32xf32>
    %90 = vector.extract_strided_slice %87 {offsets = [0, 32], sizes = [8, 32], strides = [1, 1]} : vector<8x128xf32> to vector<8x32xf32>
    %91 = vector.extract_strided_slice %88 {offsets = [0, 64], sizes = [8, 32], strides = [1, 1]} : vector<8x128xf32> to vector<8x32xf32>
    %92 = vector.extract_strided_slice %87 {offsets = [0, 96], sizes = [8, 32], strides = [1, 1]} : vector<8x128xf32> to vector<8x32xf32>
    %93 = arith.mulf %90, %76 : vector<8x32xf32>
    %94 = arith.mulf %89, %91 : vector<8x32xf32>
    %95 = arith.addf %93, %94 : vector<8x32xf32>
    %96 = math.tanh %95 : vector<8x32xf32>
    %97 = arith.mulf %92, %96 : vector<8x32xf32>
    %98 = vector.broadcast %c2_i32 : i32 to vector<8x1xi32>
    %99 = arith.cmpi slt, %98, %15 : vector<8x1xi32>
    %100 = vector.shape_cast %99 : vector<8x1xi1> to vector<8x1xi1>
    %101 = vector.broadcast %100 : vector<8x1xi1> to vector<8x32xi1>
    %102 = arith.select %101, %97, %73 : vector<8x32xi1>, vector<8x32xf32>
    %103 = vector.shape_cast %99 : vector<8x1xi1> to vector<8x1xi1>
    %104 = vector.broadcast %103 : vector<8x1xi1> to vector<8x32xi1>
    %105 = arith.select %104, %95, %76 : vector<8x32xi1>, vector<8x32xf32>
    %c3_i32 = arith.constant 3 : i32
    %c8_i32_32 = arith.constant 8 : i32
    %106 = arith.muli %c3_i32, %c8_i32_32 : i32
    %107 = tpu.assume_multiple %106, 8 : i32
    %108 = arith.index_cast %107 : i32 to index
    %c0_33 = arith.constant 0 : index
    %109 = vector.load %arg15[%108, %c0_33] : memref<64x128xf32, #tpu.memory_space<vmem>>, vector<8x128xf32>
    %cst_34 = arith.constant dense<0.000000e+00> : vector<8x128xf32>
    %110 = tpu.matmul %102, %16, %cst_34 {dimension_numbers = #tpu.dot_dimension_numbers<[1], [0], [0], [1], [0, 0, 1, 1], [], []>} : vector<8x32xf32>, vector<32x128xf32>, vector<8x128xf32> -> vector<8x128xf32>
    %111 = arith.addf %109, %110 : vector<8x128xf32>
    %112 = arith.negf %111 : vector<8x128xf32>
    %113 = math.exp %112 : vector<8x128xf32>
    %cst_35 = arith.constant 1.000000e+00 : f32
    %114 = vector.broadcast %cst_35 : f32 to vector<8x128xf32>
    %115 = arith.addf %114, %113 : vector<8x128xf32>
    %116 = arith.divf %114, %115 : vector<8x128xf32>
    %117 = math.tanh %111 : vector<8x128xf32>
    %118 = vector.extract_strided_slice %116 {offsets = [0, 0], sizes = [8, 32], strides = [1, 1]} : vector<8x128xf32> to vector<8x32xf32>
    %119 = vector.extract_strided_slice %116 {offsets = [0, 32], sizes = [8, 32], strides = [1, 1]} : vector<8x128xf32> to vector<8x32xf32>
    %120 = vector.extract_strided_slice %117 {offsets = [0, 64], sizes = [8, 32], strides = [1, 1]} : vector<8x128xf32> to vector<8x32xf32>
    %121 = vector.extract_strided_slice %116 {offsets = [0, 96], sizes = [8, 32], strides = [1, 1]} : vector<8x128xf32> to vector<8x32xf32>
    %122 = arith.mulf %119, %105 : vector<8x32xf32>
    %123 = arith.mulf %118, %120 : vector<8x32xf32>
    %124 = arith.addf %122, %123 : vector<8x32xf32>
    %125 = math.tanh %124 : vector<8x32xf32>
    %126 = arith.mulf %121, %125 : vector<8x32xf32>
    %127 = vector.broadcast %c3_i32 : i32 to vector<8x1xi32>
    %128 = arith.cmpi slt, %127, %15 : vector<8x1xi32>
    %129 = vector.shape_cast %128 : vector<8x1xi1> to vector<8x1xi1>
    %130 = vector.broadcast %129 : vector<8x1xi1> to vector<8x32xi1>
    %131 = arith.select %130, %126, %102 : vector<8x32xi1>, vector<8x32xf32>
    %132 = vector.shape_cast %128 : vector<8x1xi1> to vector<8x1xi1>
    %133 = vector.broadcast %132 : vector<8x1xi1> to vector<8x32xi1>
    %134 = arith.select %133, %124, %105 : vector<8x32xi1>, vector<8x32xf32>
    %c4_i32 = arith.constant 4 : i32
    %c8_i32_36 = arith.constant 8 : i32
    %135 = arith.muli %c4_i32, %c8_i32_36 : i32
    %136 = tpu.assume_multiple %135, 8 : i32
    %137 = arith.index_cast %136 : i32 to index
    %c0_37 = arith.constant 0 : index
    %138 = vector.load %arg15[%137, %c0_37] : memref<64x128xf32, #tpu.memory_space<vmem>>, vector<8x128xf32>
    %cst_38 = arith.constant dense<0.000000e+00> : vector<8x128xf32>
    %139 = tpu.matmul %131, %16, %cst_38 {dimension_numbers = #tpu.dot_dimension_numbers<[1], [0], [0], [1], [0, 0, 1, 1], [], []>} : vector<8x32xf32>, vector<32x128xf32>, vector<8x128xf32> -> vector<8x128xf32>
    %140 = arith.addf %138, %139 : vector<8x128xf32>
    %141 = arith.negf %140 : vector<8x128xf32>
    %142 = math.exp %141 : vector<8x128xf32>
    %cst_39 = arith.constant 1.000000e+00 : f32
    %143 = vector.broadcast %cst_39 : f32 to vector<8x128xf32>
    %144 = arith.addf %143, %142 : vector<8x128xf32>
    %145 = arith.divf %143, %144 : vector<8x128xf32>
    %146 = math.tanh %140 : vector<8x128xf32>
    %147 = vector.extract_strided_slice %145 {offsets = [0, 0], sizes = [8, 32], strides = [1, 1]} : vector<8x128xf32> to vector<8x32xf32>
    %148 = vector.extract_strided_slice %145 {offsets = [0, 32], sizes = [8, 32], strides = [1, 1]} : vector<8x128xf32> to vector<8x32xf32>
    %149 = vector.extract_strided_slice %146 {offsets = [0, 64], sizes = [8, 32], strides = [1, 1]} : vector<8x128xf32> to vector<8x32xf32>
    %150 = vector.extract_strided_slice %145 {offsets = [0, 96], sizes = [8, 32], strides = [1, 1]} : vector<8x128xf32> to vector<8x32xf32>
    %151 = arith.mulf %148, %134 : vector<8x32xf32>
    %152 = arith.mulf %147, %149 : vector<8x32xf32>
    %153 = arith.addf %151, %152 : vector<8x32xf32>
    %154 = math.tanh %153 : vector<8x32xf32>
    %155 = arith.mulf %150, %154 : vector<8x32xf32>
    %156 = vector.broadcast %c4_i32 : i32 to vector<8x1xi32>
    %157 = arith.cmpi slt, %156, %15 : vector<8x1xi32>
    %158 = vector.shape_cast %157 : vector<8x1xi1> to vector<8x1xi1>
    %159 = vector.broadcast %158 : vector<8x1xi1> to vector<8x32xi1>
    %160 = arith.select %159, %155, %131 : vector<8x32xi1>, vector<8x32xf32>
    %161 = vector.shape_cast %157 : vector<8x1xi1> to vector<8x1xi1>
    %162 = vector.broadcast %161 : vector<8x1xi1> to vector<8x32xi1>
    %163 = arith.select %162, %153, %134 : vector<8x32xi1>, vector<8x32xf32>
    %c5_i32 = arith.constant 5 : i32
    %c8_i32_40 = arith.constant 8 : i32
    %164 = arith.muli %c5_i32, %c8_i32_40 : i32
    %165 = tpu.assume_multiple %164, 8 : i32
    %166 = arith.index_cast %165 : i32 to index
    %c0_41 = arith.constant 0 : index
    %167 = vector.load %arg15[%166, %c0_41] : memref<64x128xf32, #tpu.memory_space<vmem>>, vector<8x128xf32>
    %cst_42 = arith.constant dense<0.000000e+00> : vector<8x128xf32>
    %168 = tpu.matmul %160, %16, %cst_42 {dimension_numbers = #tpu.dot_dimension_numbers<[1], [0], [0], [1], [0, 0, 1, 1], [], []>} : vector<8x32xf32>, vector<32x128xf32>, vector<8x128xf32> -> vector<8x128xf32>
    %169 = arith.addf %167, %168 : vector<8x128xf32>
    %170 = arith.negf %169 : vector<8x128xf32>
    %171 = math.exp %170 : vector<8x128xf32>
    %cst_43 = arith.constant 1.000000e+00 : f32
    %172 = vector.broadcast %cst_43 : f32 to vector<8x128xf32>
    %173 = arith.addf %172, %171 : vector<8x128xf32>
    %174 = arith.divf %172, %173 : vector<8x128xf32>
    %175 = math.tanh %169 : vector<8x128xf32>
    %176 = vector.extract_strided_slice %174 {offsets = [0, 0], sizes = [8, 32], strides = [1, 1]} : vector<8x128xf32> to vector<8x32xf32>
    %177 = vector.extract_strided_slice %174 {offsets = [0, 32], sizes = [8, 32], strides = [1, 1]} : vector<8x128xf32> to vector<8x32xf32>
    %178 = vector.extract_strided_slice %175 {offsets = [0, 64], sizes = [8, 32], strides = [1, 1]} : vector<8x128xf32> to vector<8x32xf32>
    %179 = vector.extract_strided_slice %174 {offsets = [0, 96], sizes = [8, 32], strides = [1, 1]} : vector<8x128xf32> to vector<8x32xf32>
    %180 = arith.mulf %177, %163 : vector<8x32xf32>
    %181 = arith.mulf %176, %178 : vector<8x32xf32>
    %182 = arith.addf %180, %181 : vector<8x32xf32>
    %183 = math.tanh %182 : vector<8x32xf32>
    %184 = arith.mulf %179, %183 : vector<8x32xf32>
    %185 = vector.broadcast %c5_i32 : i32 to vector<8x1xi32>
    %186 = arith.cmpi slt, %185, %15 : vector<8x1xi32>
    %187 = vector.shape_cast %186 : vector<8x1xi1> to vector<8x1xi1>
    %188 = vector.broadcast %187 : vector<8x1xi1> to vector<8x32xi1>
    %189 = arith.select %188, %184, %160 : vector<8x32xi1>, vector<8x32xf32>
    %190 = vector.shape_cast %186 : vector<8x1xi1> to vector<8x1xi1>
    %191 = vector.broadcast %190 : vector<8x1xi1> to vector<8x32xi1>
    %192 = arith.select %191, %182, %163 : vector<8x32xi1>, vector<8x32xf32>
    %c6_i32 = arith.constant 6 : i32
    %c8_i32_44 = arith.constant 8 : i32
    %193 = arith.muli %c6_i32, %c8_i32_44 : i32
    %194 = tpu.assume_multiple %193, 8 : i32
    %195 = arith.index_cast %194 : i32 to index
    %c0_45 = arith.constant 0 : index
    %196 = vector.load %arg15[%195, %c0_45] : memref<64x128xf32, #tpu.memory_space<vmem>>, vector<8x128xf32>
    %cst_46 = arith.constant dense<0.000000e+00> : vector<8x128xf32>
    %197 = tpu.matmul %189, %16, %cst_46 {dimension_numbers = #tpu.dot_dimension_numbers<[1], [0], [0], [1], [0, 0, 1, 1], [], []>} : vector<8x32xf32>, vector<32x128xf32>, vector<8x128xf32> -> vector<8x128xf32>
    %198 = arith.addf %196, %197 : vector<8x128xf32>
    %199 = arith.negf %198 : vector<8x128xf32>
    %200 = math.exp %199 : vector<8x128xf32>
    %cst_47 = arith.constant 1.000000e+00 : f32
    %201 = vector.broadcast %cst_47 : f32 to vector<8x128xf32>
    %202 = arith.addf %201, %200 : vector<8x128xf32>
    %203 = arith.divf %201, %202 : vector<8x128xf32>
    %204 = math.tanh %198 : vector<8x128xf32>
    %205 = vector.extract_strided_slice %203 {offsets = [0, 0], sizes = [8, 32], strides = [1, 1]} : vector<8x128xf32> to vector<8x32xf32>
    %206 = vector.extract_strided_slice %203 {offsets = [0, 32], sizes = [8, 32], strides = [1, 1]} : vector<8x128xf32> to vector<8x32xf32>
    %207 = vector.extract_strided_slice %204 {offsets = [0, 64], sizes = [8, 32], strides = [1, 1]} : vector<8x128xf32> to vector<8x32xf32>
    %208 = vector.extract_strided_slice %203 {offsets = [0, 96], sizes = [8, 32], strides = [1, 1]} : vector<8x128xf32> to vector<8x32xf32>
    %209 = arith.mulf %206, %192 : vector<8x32xf32>
    %210 = arith.mulf %205, %207 : vector<8x32xf32>
    %211 = arith.addf %209, %210 : vector<8x32xf32>
    %212 = math.tanh %211 : vector<8x32xf32>
    %213 = arith.mulf %208, %212 : vector<8x32xf32>
    %214 = vector.broadcast %c6_i32 : i32 to vector<8x1xi32>
    %215 = arith.cmpi slt, %214, %15 : vector<8x1xi32>
    %216 = vector.shape_cast %215 : vector<8x1xi1> to vector<8x1xi1>
    %217 = vector.broadcast %216 : vector<8x1xi1> to vector<8x32xi1>
    %218 = arith.select %217, %213, %189 : vector<8x32xi1>, vector<8x32xf32>
    %219 = vector.shape_cast %215 : vector<8x1xi1> to vector<8x1xi1>
    %220 = vector.broadcast %219 : vector<8x1xi1> to vector<8x32xi1>
    %221 = arith.select %220, %211, %192 : vector<8x32xi1>, vector<8x32xf32>
    %c7_i32 = arith.constant 7 : i32
    %c8_i32_48 = arith.constant 8 : i32
    %222 = arith.muli %c7_i32, %c8_i32_48 : i32
    %223 = tpu.assume_multiple %222, 8 : i32
    %224 = arith.index_cast %223 : i32 to index
    %c0_49 = arith.constant 0 : index
    %225 = vector.load %arg15[%224, %c0_49] : memref<64x128xf32, #tpu.memory_space<vmem>>, vector<8x128xf32>
    %cst_50 = arith.constant dense<0.000000e+00> : vector<8x128xf32>
    %226 = tpu.matmul %218, %16, %cst_50 {dimension_numbers = #tpu.dot_dimension_numbers<[1], [0], [0], [1], [0, 0, 1, 1], [], []>} : vector<8x32xf32>, vector<32x128xf32>, vector<8x128xf32> -> vector<8x128xf32>
    %227 = arith.addf %225, %226 : vector<8x128xf32>
    %228 = arith.negf %227 : vector<8x128xf32>
    %229 = math.exp %228 : vector<8x128xf32>
    %cst_51 = arith.constant 1.000000e+00 : f32
    %230 = vector.broadcast %cst_51 : f32 to vector<8x128xf32>
    %231 = arith.addf %230, %229 : vector<8x128xf32>
    %232 = arith.divf %230, %231 : vector<8x128xf32>
    %233 = math.tanh %227 : vector<8x128xf32>
    %234 = vector.extract_strided_slice %232 {offsets = [0, 0], sizes = [8, 32], strides = [1, 1]} : vector<8x128xf32> to vector<8x32xf32>
    %235 = vector.extract_strided_slice %232 {offsets = [0, 32], sizes = [8, 32], strides = [1, 1]} : vector<8x128xf32> to vector<8x32xf32>
    %236 = vector.extract_strided_slice %233 {offsets = [0, 64], sizes = [8, 32], strides = [1, 1]} : vector<8x128xf32> to vector<8x32xf32>
    %237 = vector.extract_strided_slice %232 {offsets = [0, 96], sizes = [8, 32], strides = [1, 1]} : vector<8x128xf32> to vector<8x32xf32>
    %238 = arith.mulf %235, %221 : vector<8x32xf32>
    %239 = arith.mulf %234, %236 : vector<8x32xf32>
    %240 = arith.addf %238, %239 : vector<8x32xf32>
    %241 = math.tanh %240 : vector<8x32xf32>
    %242 = arith.mulf %237, %241 : vector<8x32xf32>
    %243 = vector.broadcast %c7_i32 : i32 to vector<8x1xi32>
    %244 = arith.cmpi slt, %243, %15 : vector<8x1xi32>
    %245 = vector.shape_cast %244 : vector<8x1xi1> to vector<8x1xi1>
    %246 = vector.broadcast %245 : vector<8x1xi1> to vector<8x32xi1>
    %247 = arith.select %246, %242, %218 : vector<8x32xi1>, vector<8x32xf32>
    %248 = vector.shape_cast %244 : vector<8x1xi1> to vector<8x1xi1>
    %249 = vector.broadcast %248 : vector<8x1xi1> to vector<8x32xi1>
    %250 = arith.select %249, %240, %221 : vector<8x32xi1>, vector<8x32xf32>
    %c8_i32_52 = arith.constant 8 : i32
    %251 = math.tanh %247 : vector<8x32xf32>
    %c0_53 = arith.constant 0 : index
    %c0_54 = arith.constant 0 : index
    %252 = vector.load %arg9[%c0_53, %c0_54] : memref<32x32xf32, #tpu.memory_space<vmem>>, vector<32x32xf32>
    %cst_55 = arith.constant dense<0.000000e+00> : vector<8x32xf32>
    %253 = tpu.matmul %6, %252, %cst_55 {dimension_numbers = #tpu.dot_dimension_numbers<[1], [0], [0], [1], [0, 0, 1, 1], [], []>} : vector<8x32xf32>, vector<32x32xf32>, vector<8x32xf32> -> vector<8x32xf32>
    %c0_56 = arith.constant 0 : index
    %c0_57 = arith.constant 0 : index
    %254 = vector.load %arg10[%c0_56, %c0_57] : memref<32x32xf32, #tpu.memory_space<vmem>>, vector<32x32xf32>
    %cst_58 = arith.constant dense<0.000000e+00> : vector<8x32xf32>
    %255 = tpu.matmul %251, %254, %cst_58 {dimension_numbers = #tpu.dot_dimension_numbers<[1], [0], [0], [1], [0, 0, 1, 1], [], []>} : vector<8x32xf32>, vector<32x32xf32>, vector<8x32xf32> -> vector<8x32xf32>
    %256 = arith.addf %253, %255 : vector<8x32xf32>
    %c0_59 = arith.constant 0 : index
    %c0_60 = arith.constant 0 : index
    %257 = vector.load %arg11[%c0_59, %c0_60] : memref<1x32xf32, #tpu.memory_space<vmem>>, vector<1x32xf32>
    %258 = vector.broadcast %257 : vector<1x32xf32> to vector<8x32xf32>
    %259 = arith.addf %256, %258 : vector<8x32xf32>
    %260 = math.tanh %259 : vector<8x32xf32>
    %c0_61 = arith.constant 0 : index
    %c0_62 = arith.constant 0 : index
    %261 = vector.load %arg12[%c0_61, %c0_62] : memref<32x128xf32, #tpu.memory_space<vmem>>, vector<32x128xf32>
    %cst_63 = arith.constant dense<0.000000e+00> : vector<8x128xf32>
    %262 = tpu.matmul %260, %261, %cst_63 {dimension_numbers = #tpu.dot_dimension_numbers<[1], [0], [0], [1], [0, 0, 1, 1], [], []>} : vector<8x32xf32>, vector<32x128xf32>, vector<8x128xf32> -> vector<8x128xf32>
    %c0_64 = arith.constant 0 : index
    %c0_65 = arith.constant 0 : index
    %263 = vector.load %arg13[%c0_64, %c0_65] : memref<1x128xf32, #tpu.memory_space<vmem>>, vector<1x128xf32>
    %264 = vector.broadcast %263 : vector<1x128xf32> to vector<8x128xf32>
    %265 = arith.addf %262, %264 : vector<8x128xf32>
    %c0_66 = arith.constant 0 : index
    %c0_67 = arith.constant 0 : index
    %266 = vector.load %arg14[%c0_66, %c0_67] : memref<8x128xf32, #tpu.memory_space<vmem>>, vector<8x128xf32>
    tpu.vector_store %arg14[%c0_66, %c0_67], %265 {strides = array<i32>} : memref<8x128xf32, #tpu.memory_space<vmem>>, vector<8x128xf32>,
    return
  }
  func.func @transform_0(%arg0: i32) -> (i32, i32) {
    %c0_i32 = arith.constant 0 : i32
    %c0_i32_0 = arith.constant 0 : i32
    return %arg0, %c0_i32 : i32, i32
  }
  func.func @transform_1(%arg0: i32) -> (i32, i32, i32) {
    %c0_i32 = arith.constant 0 : i32
    %c0_i32_0 = arith.constant 0 : i32
    %c0_i32_1 = arith.constant 0 : i32
    return %arg0, %c0_i32, %c0_i32_0 : i32, i32, i32
  }
  func.func @transform_2(%arg0: i32) -> (i32, i32) {
    %c0_i32 = arith.constant 0 : i32
    %c0_i32_0 = arith.constant 0 : i32
    return %arg0, %c0_i32 : i32, i32
  }
  func.func @transform_3(%arg0: i32) -> (i32, i32) {
    %c0_i32 = arith.constant 0 : i32
    %c0_i32_0 = arith.constant 0 : i32
    %c0_i32_1 = arith.constant 0 : i32
    return %c0_i32, %c0_i32_0 : i32, i32
  }
  func.func @transform_4(%arg0: i32) -> (i32, i32) {
    %c0_i32 = arith.constant 0 : i32
    %c0_i32_0 = arith.constant 0 : i32
    %c0_i32_1 = arith.constant 0 : i32
    return %c0_i32, %c0_i32_0 : i32, i32
  }
  func.func @transform_5(%arg0: i32) -> (i32, i32) {
    %c0_i32 = arith.constant 0 : i32
    %c0_i32_0 = arith.constant 0 : i32
    %c0_i32_1 = arith.constant 0 : i32
    return %c0_i32, %c0_i32_0 : i32, i32
  }
  func.func @transform_6(%arg0: i32) -> (i32, i32) {
    %c0_i32 = arith.constant 0 : i32
    %c0_i32_0 = arith.constant 0 : i32
    %c0_i32_1 = arith.constant 0 : i32
    return %c0_i32, %c0_i32_0 : i32, i32
  }
  func.func @transform_7(%arg0: i32) -> (i32, i32) {
    %c0_i32 = arith.constant 0 : i32
    %c0_i32_0 = arith.constant 0 : i32
    %c0_i32_1 = arith.constant 0 : i32
    return %c0_i32, %c0_i32_0 : i32, i32
  }
  func.func @transform_8(%arg0: i32) -> (i32, i32) {
    %c0_i32 = arith.constant 0 : i32
    %c0_i32_0 = arith.constant 0 : i32
    %c0_i32_1 = arith.constant 0 : i32
    return %c0_i32, %c0_i32_0 : i32, i32
  }
  func.func @transform_9(%arg0: i32) -> (i32, i32) {
    %c0_i32 = arith.constant 0 : i32
    %c0_i32_0 = arith.constant 0 : i32
    %c0_i32_1 = arith.constant 0 : i32
    return %c0_i32, %c0_i32_0 : i32, i32
  }
  func.func @transform_10(%arg0: i32) -> (i32, i32) {
    %c0_i32 = arith.constant 0 : i32
    %c0_i32_0 = arith.constant 0 : i32
    %c0_i32_1 = arith.constant 0 : i32
    return %c0_i32, %c0_i32_0 : i32, i32
  }
  func.func @transform_11(%arg0: i32) -> (i32, i32) {
    %c0_i32 = arith.constant 0 : i32
    %c0_i32_0 = arith.constant 0 : i32
    %c0_i32_1 = arith.constant 0 : i32
    return %c0_i32, %c0_i32_0 : i32, i32
  }
  func.func @transform_12(%arg0: i32) -> (i32, i32) {
    %c0_i32 = arith.constant 0 : i32
    %c0_i32_0 = arith.constant 0 : i32
    %c0_i32_1 = arith.constant 0 : i32
    return %c0_i32, %c0_i32_0 : i32, i32
  }
  func.func @transform_13(%arg0: i32) -> (i32, i32) {
    %c0_i32 = arith.constant 0 : i32
    %c0_i32_0 = arith.constant 0 : i32
    return %arg0, %c0_i32 : i32, i32
  }
}

</mosaic_0001>

<llo_original>
// kernel: tpu_custom_call.1
$region0: #{tpu_custom_call.1}
  #allocation0 [shape = 'u32[]', space=smem, size = 0x4, offset = 0x4, fixed_abs, tag = 'smem constant byte address 0x4 - core index']
  #allocation1 [shape = 'u32[72,128]{1,0:T(1,128)}', space=vmem, size = 0x9000, scoped, tag = 'internal scratch']
  #allocation2 [shape = 'f32[64,128]{1,0:T(8,128)}', space=vmem, size = 0x8000, scoped, tag = 'scratch operand']
  %s0 = inlined_call_operand.vmem [shape: f32[8,32], index: 0, kind: input, shape index: {}]
  %s1 = inlined_call_operand.vmem [shape: f32[1,64,16], index: 1, kind: input, shape index: {}]
  %s2 = inlined_call_operand.vmem [shape: s32[8,1], index: 2, kind: input, shape index: {}]
  %s3 = inlined_call_operand.vmem [shape: f32[32,32], index: 3, kind: input, shape index: {}]
  %s4 = inlined_call_operand.vmem [shape: f32[1,32], index: 4, kind: input, shape index: {}]
  %s5 = inlined_call_operand.vmem [shape: f32[16,128], index: 5, kind: input, shape index: {}]
  %s6 = inlined_call_operand.vmem [shape: f32[1,128], index: 6, kind: input, shape index: {}]
  %s7 = inlined_call_operand.vmem [shape: f32[32,128], index: 7, kind: input, shape index: {}]
  %s8 = inlined_call_operand.hbm [shape: f32[32,32], index: 8, kind: input, shape index: {}]
  %s9 = inlined_call_operand.hbm [shape: f32[32,32], index: 9, kind: input, shape index: {}]
  %s10 = inlined_call_operand.vmem [shape: f32[1,32], index: 10, kind: input, shape index: {}]
  %s11 = inlined_call_operand.hbm [shape: f32[32,128], index: 11, kind: input, shape index: {}]
  %s12 = inlined_call_operand.vmem [shape: f32[1,128], index: 12, kind: input, shape index: {}]
  %s13 = inlined_call_operand.hbm [shape: f32[8,128], index: 13, kind: output, shape index: {}]
  %s14 = sld [smem:[#allocation0]]
  $region74: #{tpu_custom_call.1} parent=0
    _
  %s16 = ssub.s32 1, %s14
  %s17 = scalar_select 0, %s16, %s14
  $region1: #{tpu_custom_call.1} parent=0
    #allocation3 [shape = 'u8[16384]{0}', space=vmem, size = 0x4000, scoped, tag = 'input window, operand 8, single buffered']
    #allocation4 [shape = 's32[1]{0}', space=sflag, size = 0x4, scoped, tag = 'scoped memory for tpu_custom_call.1']
    #allocation5 [shape = 's32[1]{0}', space=sflag, size = 0x4, scoped, tag = 'scoped memory for tpu_custom_call.1']
    #allocation6 [shape = 'u8[16384]{0}', space=vmem, size = 0x4000, scoped, tag = 'input window, operand 9, single buffered']
    #allocation7 [shape = 's32[1]{0}', space=sflag, size = 0x4, scoped, tag = 'scoped memory for tpu_custom_call.1']
    #allocation8 [shape = 'u8[16384]{0}', space=vmem, size = 0x4000, scoped, tag = 'input window, operand 11, single buffered']
    #allocation9 [shape = 'u8[4096]{0}', space=vmem, size = 0x1000, scoped, tag = 'output window, operand 0, single buffered']
    %18 = vsyncpa [#allocation4], 0
    %19 = vsyncpa [#allocation7], 0
    %20 = vsyncpa [#allocation5], 0
    // Predicated region
    $region2: #{tpu_custom_call.1} parent=1 // pred_check
      _
    $region3: #{tpu_custom_call.1} parent=1 // pred_check_branch
      %22 = sbr.rel (0) target = $region5
    $region4: #{tpu_custom_call.1} parent=1 // pred_region
      _
    $region5: #{tpu_custom_call.1} parent=1 // pred_fallthru
      _
    // Predicated region
    $region6: #{tpu_custom_call.1} parent=1 // pred_check
      _
    $region7: #{tpu_custom_call.1} parent=1 // pred_check_branch
      %24 = sbr.rel (0) target = $region9
    $region8: #{tpu_custom_call.1} parent=1 // pred_region
      _
    $region9: #{tpu_custom_call.1} parent=1 // pred_fallthru
      _
    // Predicated region
    $region10: #{tpu_custom_call.1} parent=1 // pred_check
      _
    $region11: #{tpu_custom_call.1} parent=1 // pred_check_branch
      %26 = sbr.rel (0) target = $region13
    $region12: #{tpu_custom_call.1} parent=1 // pred_region
      _
    $region13: #{tpu_custom_call.1} parent=1 // pred_fallthru
      _
    // Predicated region
    $region14: #{tpu_custom_call.1} parent=1 // pred_check
      _
    $region15: #{tpu_custom_call.1} parent=1 // pred_check_branch
      %28 = sbr.rel (0) target = $region17
    $region16: #{tpu_custom_call.1} parent=1 // pred_region
      _
    $region17: #{tpu_custom_call.1} parent=1 // pred_fallthru
      _
    // Predicated region
    $region18: #{tpu_custom_call.1} parent=1 // pred_check
      _
    $region19: #{tpu_custom_call.1} parent=1 // pred_check_branch
      %30 = sbr.rel (0) target = $region21
    $region20: #{tpu_custom_call.1} parent=1 // pred_region
      _
    $region21: #{tpu_custom_call.1} parent=1 // pred_fallthru
      _
    // Predicated region
    $region22: #{tpu_custom_call.1} parent=1 // pred_check
      _
    $region23: #{tpu_custom_call.1} parent=1 // pred_check_branch
      %32 = sbr.rel (0) target = $region25
    $region24: #{tpu_custom_call.1} parent=1 // pred_region
      _
    $region25: #{tpu_custom_call.1} parent=1 // pred_fallthru
      _
    // Predicated region
    $region26: #{tpu_custom_call.1} parent=1 // pred_check
      _
    $region27: #{tpu_custom_call.1} parent=1 // pred_check_branch
      %34 = sbr.rel (0) target = $region29
    $region28: #{tpu_custom_call.1} parent=1 // pred_region
      _
    $region29: #{tpu_custom_call.1} parent=1 // pred_fallthru
      _
    // Predicated region
    $region30: #{tpu_custom_call.1} parent=1 // pred_check
      _
    $region31: #{tpu_custom_call.1} parent=1 // pred_check_branch
      %36 = sbr.rel (0) target = $region33
    $region32: #{tpu_custom_call.1} parent=1 // pred_region
      _
    $region33: #{tpu_custom_call.1} parent=1 // pred_fallthru
      _
    // Predicated region
    $region34: #{tpu_custom_call.1} parent=1 // pred_check
      _
    $region35: #{tpu_custom_call.1} parent=1 // pred_check_branch
      %38 = sbr.rel (0) target = $region37
    $region36: #{tpu_custom_call.1} parent=1 // pred_region
      %40 = vsyncadd [#allocation4], 0
      %s41 = sshll.u32 %s8, 4
      %s42 = int_to_ptr.hbm [resolvable:$true] %s41
      %s43 = sshll.u32 [#allocation3], 4
      %s44 = int_to_ptr.vmem [resolvable:$true] %s43
      %49 = dma.hbm_to_vmem [thread:$0]  %s42, 512, %s44, [#allocation4], 128, 128, 8
    $region37: #{tpu_custom_call.1} parent=1 // pred_fallthru
      _
    // Predicated region
    $region38: #{tpu_custom_call.1} parent=1 // pred_check
      _
    $region39: #{tpu_custom_call.1} parent=1 // pred_check_branch
      %51 = sbr.rel (0) target = $region41
    $region40: #{tpu_custom_call.1} parent=1 // pred_region
      %53 = vsyncadd [#allocation7], 0
      %s54 = sshll.u32 %s9, 4
      %s55 = int_to_ptr.hbm [resolvable:$true] %s54
      %s56 = sshll.u32 [#allocation6], 4
      %s57 = int_to_ptr.vmem [resolvable:$true] %s56
      %62 = dma.hbm_to_vmem [thread:$0]  %s55, 512, %s57, [#allocation7], 128, 128, 8
    $region41: #{tpu_custom_call.1} parent=1 // pred_fallthru
      _
    // Predicated region
    $region42: #{tpu_custom_call.1} parent=1 // pred_check
      _
    $region43: #{tpu_custom_call.1} parent=1 // pred_check_branch
      %64 = sbr.rel (0) target = $region45
    $region44: #{tpu_custom_call.1} parent=1 // pred_region
      _
    $region45: #{tpu_custom_call.1} parent=1 // pred_fallthru
      _
    // Predicated region
    $region46: #{tpu_custom_call.1} parent=1 // pred_check
      _
    $region47: #{tpu_custom_call.1} parent=1 // pred_check_branch
      %66 = sbr.rel (0) target = $region49
    $region48: #{tpu_custom_call.1} parent=1 // pred_region
      %68 = vsyncadd [#allocation7], 0
      %s69 = sshll.u32 %s11, 4
      %s70 = int_to_ptr.hbm [resolvable:$true] %s69
      %s71 = sshll.u32 [#allocation8], 4
      %s72 = int_to_ptr.vmem [resolvable:$true] %s71
      %77 = dma.hbm_to_vmem [thread:$0]  %s70, 512, %s72, [#allocation7], 128, 128, 8
    $region49: #{tpu_custom_call.1} parent=1 // pred_fallthru
      _
    // Predicated region
    $region50: #{tpu_custom_call.1} parent=1 // pred_check
      _
    $region51: #{tpu_custom_call.1} parent=1 // pred_check_branch
      %79 = sbr.rel (0) target = $region53
    $region52: #{tpu_custom_call.1} parent=1 // pred_region
      _
    $region53: #{tpu_custom_call.1} parent=1 // pred_fallthru
      _
    // Predicated region
    $region54: #{tpu_custom_call.1} parent=1 // pred_check
      _
    $region55: #{tpu_custom_call.1} parent=1 // pred_check_branch
      %81 = sbr.rel (0) target = $region57
    $region56: #{tpu_custom_call.1} parent=1 // pred_region
      %83 = dma.done [#allocation4], 512
    $region57: #{tpu_custom_call.1} parent=1 // pred_fallthru
      _
    // Predicated region
    $region58: #{tpu_custom_call.1} parent=1 // pred_check
      _
    $region59: #{tpu_custom_call.1} parent=1 // pred_check_branch
      %85 = sbr.rel (0) target = $region61
    $region60: #{tpu_custom_call.1} parent=1 // pred_region
      %87 = dma.done [#allocation7], 512
    $region61: #{tpu_custom_call.1} parent=1 // pred_fallthru
      _
    // Predicated region
    $region62: #{tpu_custom_call.1} parent=1 // pred_check
      _
    $region63: #{tpu_custom_call.1} parent=1 // pred_check_branch
      %89 = sbr.rel (0) target = $region65
    $region64: #{tpu_custom_call.1} parent=1 // pred_region
      %91 = dma.done [#allocation7], 512
    $region65: #{tpu_custom_call.1} parent=1 // pred_fallthru
      _
    %v92 = vld [vmem:[%s0] sm:$0xff]
    %v93 = vld [vmem:[%s3] sm:$0xff]
    %v94 = vld [vmem:[%s3 + $0x8] sm:$0xff]
    %v95 = vld [vmem:[%s3 + $0x10] sm:$0xff]
    %v96 = vld [vmem:[%s3 + $0x18] sm:$0xff]
    %v97 = vld [vmem:[%s4] sm:$0x1]
    %v99 = vperm.slane %v97, 0
    %vm101 = vcmask 261120
    %v103 = vsel %vm101, %v92, 0
    %105 = vmatpush.msra.mxu0 0.0
    %106 = vmatpush.msra.mxu0 0.0
    %107 = vmatpush.msra.mxu0 0.0
    %108 = vmatpush.msra.mxu0 0.0
    %109 = vmatpush.msra.mxu0 0.0
    %110 = vmatpush.msra.mxu0 0.0
    %111 = vmatpush.msra.mxu0 0.0
    %112 = vmatpush.msra.mxu0 0.0
    %113 = vmatpush.msra.mxu0 0.0
    %114 = vmatpush.msra.mxu0 0.0
    %115 = vmatpush.msra.mxu0 0.0
    %116 = vmatpush.msra.mxu0 0.0
    %117 = vmatpush.msra.mxu0 %v96
    %118 = vmatpush.msra.mxu0 %v95
    %119 = vmatpush.msra.mxu0 %v94
    %120 = vmatpush.msra.mxu0 %v93
    %121 = vmatmul.f32.gmra.mxu0 %v103
    %v122 = vpop.f32.mrf.mxu0
    %v123 = vadd.f32 %v99, %v122
    %124 = vdwg.mxu0
    %v125 = vtanh.pop %v123
    %v126 = vld [vmem:[%s1] sm:$0xff]
    %v127 = vld [vmem:[%s1 + $0x8] sm:$0xff]
    %v128 = vld [vmem:[%s1 + $0x10] sm:$0xff]
    %v129 = vld [vmem:[%s1 + $0x18] sm:$0xff]
    %v130 = vld [vmem:[%s1 + $0x20] sm:$0xff]
    %v131 = vld [vmem:[%s1 + $0x28] sm:$0xff]
    %v132 = vld [vmem:[%s1 + $0x30] sm:$0xff]
    %v133 = vld [vmem:[%s1 + $0x38] sm:$0xff]
    %v134 = vld [vmem:[%s5] sm:$0xff]
    %v135 = vld [vmem:[%s5 + $0x8] sm:$0xff]
    %v136 = vld [vmem:[%s6] sm:$0x1]
    %v138 = vperm.slane %v136, 0
    %vm140 = vcmask 130048
    %v142 = vsel %vm140, %v126, 0
    %v145 = vsel %vm140, %v127, 0
    %v148 = vsel %vm140, %v128, 0
    %v151 = vsel %vm140, %v129, 0
    %v154 = vsel %vm140, %v130, 0
    %v157 = vsel %vm140, %v131, 0
    %v160 = vsel %vm140, %v132, 0
    %v163 = vsel %vm140, %v133, 0
    %165 = vmatpush.msra.mxu0 0.0
    %166 = vmatpush.msra.mxu0 0.0
    %167 = vmatpush.msra.mxu0 0.0
    %168 = vmatpush.msra.mxu0 0.0
    %169 = vmatpush.msra.mxu0 0.0
    %170 = vmatpush.msra.mxu0 0.0
    %171 = vmatpush.msra.mxu0 0.0
    %172 = vmatpush.msra.mxu0 0.0
    %173 = vmatpush.msra.mxu0 0.0
    %174 = vmatpush.msra.mxu0 0.0
    %175 = vmatpush.msra.mxu0 0.0
    %176 = vmatpush.msra.mxu0 0.0
    %177 = vmatpush.msra.mxu0 0.0
    %178 = vmatpush.msra.mxu0 0.0
    %179 = vmatpush.msra.mxu0 %v135
    %180 = vmatpush.msra.mxu0 %v134
    %181 = vmatmul.f32.gmra.mxu0 %v142
    %v182 = vpop.f32.mrf.mxu0
    %v183 = vadd.f32 %v138, %v182
    %184 = vmatmul.f32.gmra.mxu0 %v145
    %v185 = vpop.f32.mrf.mxu0
    %v186 = vadd.f32 %v138, %v185
    %187 = vmatmul.f32.gmra.mxu0 %v148
    %v188 = vpop.f32.mrf.mxu0
    %v189 = vadd.f32 %v138, %v188
    %190 = vmatmul.f32.gmra.mxu0 %v151
    %v191 = vpop.f32.mrf.mxu0
    %v192 = vadd.f32 %v138, %v191
    %193 = vmatmul.f32.gmra.mxu0 %v154
    %v194 = vpop.f32.mrf.mxu0
    %v195 = vadd.f32 %v138, %v194
    %196 = vmatmul.f32.gmra.mxu0 %v157
    %v197 = vpop.f32.mrf.mxu0
    %v198 = vadd.f32 %v138, %v197
    %199 = vmatmul.f32.gmra.mxu0 %v160
    %v200 = vpop.f32.mrf.mxu0
    %v201 = vadd.f32 %v138, %v200
    %202 = vmatmul.f32.gmra.mxu0 %v163
    %v203 = vpop.f32.mrf.mxu0
    %v204 = vadd.f32 %v138, %v203
    %205 = vdwg.mxu0
    %206 = vst [vmem:[#allocation2] sm:$0xff] %v183
    %207 = vst [vmem:[#allocation2 + $0x8] sm:$0xff] %v186
    %208 = vst [vmem:[#allocation2 + $0x10] sm:$0xff] %v189
    %209 = vst [vmem:[#allocation2 + $0x18] sm:$0xff] %v192
    %210 = vst [vmem:[#allocation2 + $0x20] sm:$0xff] %v195
    %211 = vst [vmem:[#allocation2 + $0x28] sm:$0xff] %v198
    %212 = vst [vmem:[#allocation2 + $0x30] sm:$0xff] %v201
    %213 = vst [vmem:[#allocation2 + $0x38] sm:$0xff] %v204
    %v214 = vld [vmem:[%s2] sm:$0xff]
    %v215 = vld [vmem:[%s7] sm:$0xff]
    %v216 = vld [vmem:[%s7 + $0x8] sm:$0xff]
    %v217 = vld [vmem:[%s7 + $0x10] sm:$0xff]
    %v218 = vld [vmem:[%s7 + $0x18] sm:$0xff]
    %v219 = vld [vmem:[#allocation2] sm:$0xff]
    %v221 = vsel %vm101, 0.0, 0
    %223 = vmatpush.msra.mxu0 0.0
    %224 = vmatpush.msra.mxu0 0.0
    %225 = vmatpush.msra.mxu0 0.0
    %226 = vmatpush.msra.mxu0 0.0
    %227 = vmatpush.msra.mxu0 0.0
    %228 = vmatpush.msra.mxu0 0.0
    %229 = vmatpush.msra.mxu0 0.0
    %230 = vmatpush.msra.mxu0 0.0
    %231 = vmatpush.msra.mxu0 0.0
    %232 = vmatpush.msra.mxu0 0.0
    %233 = vmatpush.msra.mxu0 0.0
    %234 = vmatpush.msra.mxu0 0.0
    %235 = vmatpush.msra.mxu0 %v218
    %236 = vmatpush.msra.mxu0 %v217
    %237 = vmatpush.msra.mxu0 %v216
    %238 = vmatpush.msra.mxu0 %v215
    %239 = vmatmul.f32.gmra.mxu0 %v221
    %v240 = vpop.f32.mrf.mxu0
    %v241 = vadd.f32 0.0, %v240
    %242 = vdwg.mxu0
    %v243 = vadd.f32 %v219, %v241
    %v244 = vxor.u32 %v243, 2147483648
    %v245 = vmul.f32 %v244, 1.442695
    %v246 = vpow.pop %v245
    %v247 = vadd.f32 %v246, 1.0
    %v248 = vrcp.pop %v247
    %v249 = vmul.f32 %v247, %v248
    %v250 = vsub.f32 1.0, %v249
    %v251 = vmul.f32 %v248, %v250
    %v252 = vadd.f32 %v248, %v251
    %vm253 = vweird.f32 %v247
    %vm254 = vweird.f32 %v248
    %vm255 = vmor %vm253, %vm254
    %v256 = vsel %vm255, %v248, %v252
    %v257 = vand.u32 2147483647, %v247
    %vm258 = vcmp.eq.f32.partialorder %v257, 8.507059e+37
    %v259 = vand.u32 %v247, 2147483648
    %v260 = vor.u32 1.1754944e-38, %v259
    %v261 = vsel %vm258, %v260, %v256
    %v262 = vmul.f32 1.0, %v261
    %v263 = vtanh.pop %v243
    %v264 = vmul.f32 %v262, 0.0
    %266 = vrot.lane.b32.xlu0 %v263, 64
    %v267 = vpop.permute.xlu0 %266
    %v269 = vmul.f32 %v262, %v267
    %271 = vrot.lane.b32.xlu0 %v269, 32
    %v272 = vpop.permute.xlu0 %271
    %v274 = vadd.f32 %v264, %v272
    %v275 = vtanh.pop %v274
    %277 = vrot.lane.b32.xlu0 %v275, 64
    %v278 = vpop.permute.xlu0 %277
    %v280 = vmul.f32 %v262, %v278
    %vm281 = vcmp.gt.s32.totalorder %v214, 0
    %v282 = vsel %vm281, 1, 0
    %283 = vset.pattern.permute.xlu0 0
    %284 = vperm.xlu0 %283, %v282
    %v285 = vpop.permute.xlu0 %284
    %vm286 = vcmp.eq.s32.totalorder %v285, 1
    %v287 = vsel %vm286, %v280, 0.0
    %v288 = vsel %vm286, %v274, 0.0
    %s289 = scalar_lea.vmem [#allocation2], 8
    %v290 = vld [vmem:[%s289] sm:$0xff]
    %292 = vrot.lane.b32.xlu0 %v287, 32
    %v293 = vpop.permute.xlu0 %292
    %v294 = vsel %vm101, %v293, 0
    %296 = vmatpush.msra.mxu0 0.0
    %297 = vmatpush.msra.mxu0 0.0
    %298 = vmatpush.msra.mxu0 0.0
    %299 = vmatpush.msra.mxu0 0.0
    %300 = vmatpush.msra.mxu0 0.0
    %301 = vmatpush.msra.mxu0 0.0
    %302 = vmatpush.msra.mxu0 0.0
    %303 = vmatpush.msra.mxu0 0.0
    %304 = vmatpush.msra.mxu0 0.0
    %305 = vmatpush.msra.mxu0 0.0
    %306 = vmatpush.msra.mxu0 0.0
    %307 = vmatpush.msra.mxu0 0.0
    %308 = vmatpush.msra.mxu0 %v218
    %309 = vmatpush.msra.mxu0 %v217
    %310 = vmatpush.msra.mxu0 %v216
    %311 = vmatpush.msra.mxu0 %v215
    %312 = vmatmul.f32.gmra.mxu0 %v294
    %v313 = vpop.f32.mrf.mxu0
    %v314 = vadd.f32 0.0, %v313
    %315 = vdwg.mxu0
    %v316 = vadd.f32 %v290, %v314
    %v317 = vxor.u32 %v316, 2147483648
    %v318 = vmul.f32 %v317, 1.442695
    %v319 = vpow.pop %v318
    %v320 = vadd.f32 %v319, 1.0
    %v321 = vrcp.pop %v320
    %v322 = vmul.f32 %v320, %v321
    %v323 = vsub.f32 1.0, %v322
    %v324 = vmul.f32 %v321, %v323
    %v325 = vadd.f32 %v321, %v324
    %vm326 = vweird.f32 %v320
    %vm327 = vweird.f32 %v321
    %vm328 = vmor %vm326, %vm327
    %v329 = vsel %vm328, %v321, %v325
    %v330 = vand.u32 2147483647, %v320
    %vm331 = vcmp.eq.f32.partialorder %v330, 8.507059e+37
    %v332 = vand.u32 %v320, 2147483648
    %v333 = vor.u32 1.1754944e-38, %v332
    %v334 = vsel %vm331, %v333, %v329
    %v335 = vmul.f32 1.0, %v334
    %v336 = vtanh.pop %v316
    %v337 = vmul.f32 %v335, %v288
    %339 = vrot.lane.b32.xlu0 %v336, 64
    %v340 = vpop.permute.xlu0 %339
    %v342 = vmul.f32 %v335, %v340
    %344 = vrot.lane.b32.xlu0 %v342, 32
    %v345 = vpop.permute.xlu0 %344
    %v347 = vadd.f32 %v337, %v345
    %v348 = vtanh.pop %v347
    %350 = vrot.lane.b32.xlu0 %v348, 64
    %v351 = vpop.permute.xlu0 %350
    %v353 = vmul.f32 %v335, %v351
    %vm354 = vcmp.gt.s32.totalorder %v214, 1
    %v355 = vsel %vm354, 1, 0
    %356 = vset.pattern.permute.xlu0 0
    %357 = vperm.xlu0 %356, %v355
    %v358 = vpop.permute.xlu0 %357
    %vm359 = vcmp.eq.s32.totalorder %v358, 1
    %v360 = vsel %vm359, %v353, %v287
    %v361 = vsel %vm359, %v347, %v288
    %s362 = scalar_lea.vmem [#allocation2], 16
    %v363 = vld [vmem:[%s362] sm:$0xff]
    %365 = vrot.lane.b32.xlu0 %v360, 32
    %v366 = vpop.permute.xlu0 %365
    %v367 = vsel %vm101, %v366, 0
    %369 = vmatpush.msra.mxu0 0.0
    %370 = vmatpush.msra.mxu0 0.0
    %371 = vmatpush.msra.mxu0 0.0
    %372 = vmatpush.msra.mxu0 0.0
    %373 = vmatpush.msra.mxu0 0.0
    %374 = vmatpush.msra.mxu0 0.0
    %375 = vmatpush.msra.mxu0 0.0
    %376 = vmatpush.msra.mxu0 0.0
    %377 = vmatpush.msra.mxu0 0.0
    %378 = vmatpush.msra.mxu0 0.0
    %379 = vmatpush.msra.mxu0 0.0
    %380 = vmatpush.msra.mxu0 0.0
    %381 = vmatpush.msra.mxu0 %v218
    %382 = vmatpush.msra.mxu0 %v217
    %383 = vmatpush.msra.mxu0 %v216
    %384 = vmatpush.msra.mxu0 %v215
    %385 = vmatmul.f32.gmra.mxu0 %v367
    %v386 = vpop.f32.mrf.mxu0
    %v387 = vadd.f32 0.0, %v386
    %388 = vdwg.mxu0
    %v389 = vadd.f32 %v363, %v387
    %v390 = vxor.u32 %v389, 2147483648
    %v391 = vmul.f32 %v390, 1.442695
    %v392 = vpow.pop %v391
    %v393 = vadd.f32 %v392, 1.0
    %v394 = vrcp.pop %v393
    %v395 = vmul.f32 %v393, %v394
    %v396 = vsub.f32 1.0, %v395
    %v397 = vmul.f32 %v394, %v396
    %v398 = vadd.f32 %v394, %v397
    %vm399 = vweird.f32 %v393
    %vm400 = vweird.f32 %v394
    %vm401 = vmor %vm399, %vm400
    %v402 = vsel %vm401, %v394, %v398
    %v403 = vand.u32 2147483647, %v393
    %vm404 = vcmp.eq.f32.partialorder %v403, 8.507059e+37
    %v405 = vand.u32 %v393, 2147483648
    %v406 = vor.u32 1.1754944e-38, %v405
    %v407 = vsel %vm404, %v406, %v402
    %v408 = vmul.f32 1.0, %v407
    %v409 = vtanh.pop %v389
    %v410 = vmul.f32 %v408, %v361
    %412 = vrot.lane.b32.xlu0 %v409, 64
    %v413 = vpop.permute.xlu0 %412
    %v415 = vmul.f32 %v408, %v413
    %417 = vrot.lane.b32.xlu0 %v415, 32
    %v418 = vpop.permute.xlu0 %417
    %v420 = vadd.f32 %v410, %v418
    %v421 = vtanh.pop %v420
    %423 = vrot.lane.b32.xlu0 %v421, 64
    %v424 = vpop.permute.xlu0 %423
    %v426 = vmul.f32 %v408, %v424
    %vm427 = vcmp.gt.s32.totalorder %v214, 2
    %v428 = vsel %vm427, 1, 0
    %429 = vset.pattern.permute.xlu0 0
    %430 = vperm.xlu0 %429, %v428
    %v431 = vpop.permute.xlu0 %430
    %vm432 = vcmp.eq.s32.totalorder %v431, 1
    %v433 = vsel %vm432, %v426, %v360
    %v434 = vsel %vm432, %v420, %v361
    %s435 = scalar_lea.vmem [#allocation2], 24
    %v436 = vld [vmem:[%s435] sm:$0xff]
    %438 = vrot.lane.b32.xlu0 %v433, 32
    %v439 = vpop.permute.xlu0 %438
    %v440 = vsel %vm101, %v439, 0
    %442 = vmatpush.msra.mxu0 0.0
    %443 = vmatpush.msra.mxu0 0.0
    %444 = vmatpush.msra.mxu0 0.0
    %445 = vmatpush.msra.mxu0 0.0
    %446 = vmatpush.msra.mxu0 0.0
    %447 = vmatpush.msra.mxu0 0.0
    %448 = vmatpush.msra.mxu0 0.0
    %449 = vmatpush.msra.mxu0 0.0
    %450 = vmatpush.msra.mxu0 0.0
    %451 = vmatpush.msra.mxu0 0.0
    %452 = vmatpush.msra.mxu0 0.0
    %453 = vmatpush.msra.mxu0 0.0
    %454 = vmatpush.msra.mxu0 %v218
    %455 = vmatpush.msra.mxu0 %v217
    %456 = vmatpush.msra.mxu0 %v216
    %457 = vmatpush.msra.mxu0 %v215
    %458 = vmatmul.f32.gmra.mxu0 %v440
    %v459 = vpop.f32.mrf.mxu0
    %v460 = vadd.f32 0.0, %v459
    %461 = vdwg.mxu0
    %v462 = vadd.f32 %v436, %v460
    %v463 = vxor.u32 %v462, 2147483648
    %v464 = vmul.f32 %v463, 1.442695
    %v465 = vpow.pop %v464
    %v466 = vadd.f32 %v465, 1.0
    %v467 = vrcp.pop %v466
    %v468 = vmul.f32 %v466, %v467
    %v469 = vsub.f32 1.0, %v468
    %v470 = vmul.f32 %v467, %v469
    %v471 = vadd.f32 %v467, %v470
    %vm472 = vweird.f32 %v466
    %vm473 = vweird.f32 %v467
    %vm474 = vmor %vm472, %vm473
    %v475 = vsel %vm474, %v467, %v471
    %v476 = vand.u32 2147483647, %v466
    %vm477 = vcmp.eq.f32.partialorder %v476, 8.507059e+37
    %v478 = vand.u32 %v466, 2147483648
    %v479 = vor.u32 1.1754944e-38, %v478
    %v480 = vsel %vm477, %v479, %v475
    %v481 = vmul.f32 1.0, %v480
    %v482 = vtanh.pop %v462
    %v483 = vmul.f32 %v481, %v434
    %485 = vrot.lane.b32.xlu0 %v482, 64
    %v486 = vpop.permute.xlu0 %485
    %v488 = vmul.f32 %v481, %v486
    %490 = vrot.lane.b32.xlu0 %v488, 32
    %v491 = vpop.permute.xlu0 %490
    %v493 = vadd.f32 %v483, %v491
    %v494 = vtanh.pop %v493
    %496 = vrot.lane.b32.xlu0 %v494, 64
    %v497 = vpop.permute.xlu0 %496
    %v499 = vmul.f32 %v481, %v497
    %vm500 = vcmp.gt.s32.totalorder %v214, 3
    %v501 = vsel %vm500, 1, 0
    %502 = vset.pattern.permute.xlu0 0
    %503 = vperm.xlu0 %502, %v501
    %v504 = vpop.permute.xlu0 %503
    %vm505 = vcmp.eq.s32.totalorder %v504, 1
    %v506 = vsel %vm505, %v499, %v433
    %v507 = vsel %vm505, %v493, %v434
    %s508 = scalar_lea.vmem [#allocation2], 32
    %v509 = vld [vmem:[%s508] sm:$0xff]
    %511 = vrot.lane.b32.xlu0 %v506, 32
    %v512 = vpop.permute.xlu0 %511
    %v513 = vsel %vm101, %v512, 0
    %515 = vmatpush.msra.mxu0 0.0
    %516 = vmatpush.msra.mxu0 0.0
    %517 = vmatpush.msra.mxu0 0.0
    %518 = vmatpush.msra.mxu0 0.0
    %519 = vmatpush.msra.mxu0 0.0
    %520 = vmatpush.msra.mxu0 0.0
    %521 = vmatpush.msra.mxu0 0.0
    %522 = vmatpush.msra.mxu0 0.0
    %523 = vmatpush.msra.mxu0 0.0
    %524 = vmatpush.msra.mxu0 0.0
    %525 = vmatpush.msra.mxu0 0.0
    %526 = vmatpush.msra.mxu0 0.0
    %527 = vmatpush.msra.mxu0 %v218
    %528 = vmatpush.msra.mxu0 %v217
    %529 = vmatpush.msra.mxu0 %v216
    %530 = vmatpush.msra.mxu0 %v215
    %531 = vmatmul.f32.gmra.mxu0 %v513
    %v532 = vpop.f32.mrf.mxu0
    %v533 = vadd.f32 0.0, %v532
    %534 = vdwg.mxu0
    %v535 = vadd.f32 %v509, %v533
    %v536 = vxor.u32 %v535, 2147483648
    %v537 = vmul.f32 %v536, 1.442695
    %v538 = vpow.pop %v537
    %v539 = vadd.f32 %v538, 1.0
    %v540 = vrcp.pop %v539
    %v541 = vmul.f32 %v539, %v540
    %v542 = vsub.f32 1.0, %v541
    %v543 = vmul.f32 %v540, %v542
    %v544 = vadd.f32 %v540, %v543
    %vm545 = vweird.f32 %v539
    %vm546 = vweird.f32 %v540
    %vm547 = vmor %vm545, %vm546
    %v548 = vsel %vm547, %v540, %v544
    %v549 = vand.u32 2147483647, %v539
    %vm550 = vcmp.eq.f32.partialorder %v549, 8.507059e+37
    %v551 = vand.u32 %v539, 2147483648
    %v552 = vor.u32 1.1754944e-38, %v551
    %v553 = vsel %vm550, %v552, %v548
    %v554 = vmul.f32 1.0, %v553
    %v555 = vtanh.pop %v535
    %v556 = vmul.f32 %v554, %v507
    %558 = vrot.lane.b32.xlu0 %v555, 64
    %v559 = vpop.permute.xlu0 %558
    %v561 = vmul.f32 %v554, %v559
    %563 = vrot.lane.b32.xlu0 %v561, 32
    %v564 = vpop.permute.xlu0 %563
    %v566 = vadd.f32 %v556, %v564
    %v567 = vtanh.pop %v566
    %569 = vrot.lane.b32.xlu0 %v567, 64
    %v570 = vpop.permute.xlu0 %569
    %v572 = vmul.f32 %v554, %v570
    %vm573 = vcmp.gt.s32.totalorder %v214, 4
    %v574 = vsel %vm573, 1, 0
    %575 = vset.pattern.permute.xlu0 0
    %576 = vperm.xlu0 %575, %v574
    %v577 = vpop.permute.xlu0 %576
    %vm578 = vcmp.eq.s32.totalorder %v577, 1
    %v579 = vsel %vm578, %v572, %v506
    %v580 = vsel %vm578, %v566, %v507
    %s581 = scalar_lea.vmem [#allocation2], 40
    %v582 = vld [vmem:[%s581] sm:$0xff]
    %584 = vrot.lane.b32.xlu0 %v579, 32
    %v585 = vpop.permute.xlu0 %584
    %v586 = vsel %vm101, %v585, 0
    %588 = vmatpush.msra.mxu0 0.0
    %589 = vmatpush.msra.mxu0 0.0
    %590 = vmatpush.msra.mxu0 0.0
    %591 = vmatpush.msra.mxu0 0.0
    %592 = vmatpush.msra.mxu0 0.0
    %593 = vmatpush.msra.mxu0 0.0
    %594 = vmatpush.msra.mxu0 0.0
    %595 = vmatpush.msra.mxu0 0.0
    %596 = vmatpush.msra.mxu0 0.0
    %597 = vmatpush.msra.mxu0 0.0
    %598 = vmatpush.msra.mxu0 0.0
    %599 = vmatpush.msra.mxu0 0.0
    %600 = vmatpush.msra.mxu0 %v218
    %601 = vmatpush.msra.mxu0 %v217
    %602 = vmatpush.msra.mxu0 %v216
    %603 = vmatpush.msra.mxu0 %v215
    %604 = vmatmul.f32.gmra.mxu0 %v586
    %v605 = vpop.f32.mrf.mxu0
    %v606 = vadd.f32 0.0, %v605
    %607 = vdwg.mxu0
    %v608 = vadd.f32 %v582, %v606
    %v609 = vxor.u32 %v608, 2147483648
    %v610 = vmul.f32 %v609, 1.442695
    %v611 = vpow.pop %v610
    %v612 = vadd.f32 %v611, 1.0
    %v613 = vrcp.pop %v612
    %v614 = vmul.f32 %v612, %v613
    %v615 = vsub.f32 1.0, %v614
    %v616 = vmul.f32 %v613, %v615
    %v617 = vadd.f32 %v613, %v616
    %vm618 = vweird.f32 %v612
    %vm619 = vweird.f32 %v613
    %vm620 = vmor %vm618, %vm619
    %v621 = vsel %vm620, %v613, %v617
    %v622 = vand.u32 2147483647, %v612
    %vm623 = vcmp.eq.f32.partialorder %v622, 8.507059e+37
    %v624 = vand.u32 %v612, 2147483648
    %v625 = vor.u32 1.1754944e-38, %v624
    %v626 = vsel %vm623, %v625, %v621
    %v627 = vmul.f32 1.0, %v626
    %v628 = vtanh.pop %v608
    %v629 = vmul.f32 %v627, %v580
    %631 = vrot.lane.b32.xlu0 %v628, 64
    %v632 = vpop.permute.xlu0 %631
    %v634 = vmul.f32 %v627, %v632
    %636 = vrot.lane.b32.xlu0 %v634, 32
    %v637 = vpop.permute.xlu0 %636
    %v639 = vadd.f32 %v629, %v637
    %v640 = vtanh.pop %v639
    %642 = vrot.lane.b32.xlu0 %v640, 64
    %v643 = vpop.permute.xlu0 %642
    %v645 = vmul.f32 %v627, %v643
    %vm646 = vcmp.gt.s32.totalorder %v214, 5
    %v647 = vsel %vm646, 1, 0
    %648 = vset.pattern.permute.xlu0 0
    %649 = vperm.xlu0 %648, %v647
    %v650 = vpop.permute.xlu0 %649
    %vm651 = vcmp.eq.s32.totalorder %v650, 1
    %v652 = vsel %vm651, %v645, %v579
    %v653 = vsel %vm651, %v639, %v580
    %s654 = scalar_lea.vmem [#allocation2], 48
    %v655 = vld [vmem:[%s654] sm:$0xff]
    %657 = vrot.lane.b32.xlu0 %v652, 32
    %v658 = vpop.permute.xlu0 %657
    %v659 = vsel %vm101, %v658, 0
    %661 = vmatpush.msra.mxu0 0.0
    %662 = vmatpush.msra.mxu0 0.0
    %663 = vmatpush.msra.mxu0 0.0
    %664 = vmatpush.msra.mxu0 0.0
    %665 = vmatpush.msra.mxu0 0.0
    %666 = vmatpush.msra.mxu0 0.0
    %667 = vmatpush.msra.mxu0 0.0
    %668 = vmatpush.msra.mxu0 0.0
    %669 = vmatpush.msra.mxu0 0.0
    %670 = vmatpush.msra.mxu0 0.0
    %671 = vmatpush.msra.mxu0 0.0
    %672 = vmatpush.msra.mxu0 0.0
    %673 = vmatpush.msra.mxu0 %v218
    %674 = vmatpush.msra.mxu0 %v217
    %675 = vmatpush.msra.mxu0 %v216
    %676 = vmatpush.msra.mxu0 %v215
    %677 = vmatmul.f32.gmra.mxu0 %v659
    %v678 = vpop.f32.mrf.mxu0
    %v679 = vadd.f32 0.0, %v678
    %680 = vdwg.mxu0
    %v681 = vadd.f32 %v655, %v679
    %v682 = vxor.u32 %v681, 2147483648
    %v683 = vmul.f32 %v682, 1.442695
    %v684 = vpow.pop %v683
    %v685 = vadd.f32 %v684, 1.0
    %v686 = vrcp.pop %v685
    %v687 = vmul.f32 %v685, %v686
    %v688 = vsub.f32 1.0, %v687
    %v689 = vmul.f32 %v686, %v688
    %v690 = vadd.f32 %v686, %v689
    %vm691 = vweird.f32 %v685
    %vm692 = vweird.f32 %v686
    %vm693 = vmor %vm691, %vm692
    %v694 = vsel %vm693, %v686, %v690
    %v695 = vand.u32 2147483647, %v685
    %vm696 = vcmp.eq.f32.partialorder %v695, 8.507059e+37
    %v697 = vand.u32 %v685, 2147483648
    %v698 = vor.u32 1.1754944e-38, %v697
    %v699 = vsel %vm696, %v698, %v694
    %v700 = vmul.f32 1.0, %v699
    %v701 = vtanh.pop %v681
    %v702 = vmul.f32 %v700, %v653
    %704 = vrot.lane.b32.xlu0 %v701, 64
    %v705 = vpop.permute.xlu0 %704
    %v707 = vmul.f32 %v700, %v705
    %709 = vrot.lane.b32.xlu0 %v707, 32
    %v710 = vpop.permute.xlu0 %709
    %v712 = vadd.f32 %v702, %v710
    %v713 = vtanh.pop %v712
    %715 = vrot.lane.b32.xlu0 %v713, 64
    %v716 = vpop.permute.xlu0 %715
    %v718 = vmul.f32 %v700, %v716
    %vm719 = vcmp.gt.s32.totalorder %v214, 6
    %v720 = vsel %vm719, 1, 0
    %721 = vset.pattern.permute.xlu0 0
    %722 = vperm.xlu0 %721, %v720
    %v723 = vpop.permute.xlu0 %722
    %vm724 = vcmp.eq.s32.totalorder %v723, 1
    %v725 = vsel %vm724, %v718, %v652
    %v726 = vsel %vm724, %v712, %v653
    %s727 = scalar_lea.vmem [#allocation2], 56
    %v728 = vld [vmem:[%s727] sm:$0xff]
    %730 = vrot.lane.b32.xlu0 %v725, 32
    %v731 = vpop.permute.xlu0 %730
    %v732 = vsel %vm101, %v731, 0
    %734 = vmatpush.msra.mxu0 0.0
    %735 = vmatpush.msra.mxu0 0.0
    %736 = vmatpush.msra.mxu0 0.0
    %737 = vmatpush.msra.mxu0 0.0
    %738 = vmatpush.msra.mxu0 0.0
    %739 = vmatpush.msra.mxu0 0.0
    %740 = vmatpush.msra.mxu0 0.0
    %741 = vmatpush.msra.mxu0 0.0
    %742 = vmatpush.msra.mxu0 0.0
    %743 = vmatpush.msra.mxu0 0.0
    %744 = vmatpush.msra.mxu0 0.0
    %745 = vmatpush.msra.mxu0 0.0
    %746 = vmatpush.msra.mxu0 %v218
    %747 = vmatpush.msra.mxu0 %v217
    %748 = vmatpush.msra.mxu0 %v216
    %749 = vmatpush.msra.mxu0 %v215
    %750 = vmatmul.f32.gmra.mxu0 %v732
    %v751 = vpop.f32.mrf.mxu0
    %v752 = vadd.f32 0.0, %v751
    %753 = vdwg.mxu0
    %v754 = vadd.f32 %v728, %v752
    %v755 = vxor.u32 %v754, 2147483648
    %v756 = vmul.f32 %v755, 1.442695
    %v757 = vpow.pop %v756
    %v758 = vadd.f32 %v757, 1.0
    %v759 = vrcp.pop %v758
    %v760 = vmul.f32 %v758, %v759
    %v761 = vsub.f32 1.0, %v760
    %v762 = vmul.f32 %v759, %v761
    %v763 = vadd.f32 %v759, %v762
    %vm764 = vweird.f32 %v758
    %vm765 = vweird.f32 %v759
    %vm766 = vmor %vm764, %vm765
    %v767 = vsel %vm766, %v759, %v763
    %v768 = vand.u32 2147483647, %v758
    %vm769 = vcmp.eq.f32.partialorder %v768, 8.507059e+37
    %v770 = vand.u32 %v758, 2147483648
    %v771 = vor.u32 1.1754944e-38, %v770
    %v772 = vsel %vm769, %v771, %v767
    %v773 = vmul.f32 1.0, %v772
    %v774 = vtanh.pop %v754
    %v775 = vmul.f32 %v773, %v726
    %777 = vrot.lane.b32.xlu0 %v774, 64
    %v778 = vpop.permute.xlu0 %777
    %v780 = vmul.f32 %v773, %v778
    %782 = vrot.lane.b32.xlu0 %v780, 32
    %v783 = vpop.permute.xlu0 %782
    %v785 = vadd.f32 %v775, %v783
    %v786 = vtanh.pop %v785
    %788 = vrot.lane.b32.xlu0 %v786, 64
    %v789 = vpop.permute.xlu0 %788
    %v791 = vmul.f32 %v773, %v789
    %vm792 = vcmp.gt.s32.totalorder %v214, 7
    %v793 = vsel %vm792, 1, 0
    %794 = vset.pattern.permute.xlu0 0
    %795 = vperm.xlu0 %794, %v793
    %v796 = vpop.permute.xlu0 %795
    %vm797 = vcmp.eq.s32.totalorder %v796, 1
    %v798 = vsel %vm797, %v791, %v725
    %v799 = vtanh.pop %v798
    %v800 = vld [vmem:[#allocation3] sm:$0xff]
    %v801 = vld [vmem:[#allocation3 + $0x8] sm:$0xff]
    %v802 = vld [vmem:[#allocation3 + $0x10] sm:$0xff]
    %v803 = vld [vmem:[#allocation3 + $0x18] sm:$0xff]
    %v804 = vld [vmem:[#allocation6] sm:$0xff]
    %v805 = vld [vmem:[#allocation6 + $0x8] sm:$0xff]
    %v806 = vld [vmem:[#allocation6 + $0x10] sm:$0xff]
    %v807 = vld [vmem:[#allocation6 + $0x18] sm:$0xff]
    %809 = vrot.lane.b32.xlu0 %v799, 32
    %v810 = vpop.permute.xlu0 %809
    %v811 = vsel %vm101, %v810, 0
    %813 = vmatpush.msra.mxu0 0.0
    %814 = vmatpush.msra.mxu0 0.0
    %815 = vmatpush.msra.mxu0 0.0
    %816 = vmatpush.msra.mxu0 0.0
    %817 = vmatpush.msra.mxu0 0.0
    %818 = vmatpush.msra.mxu0 0.0
    %819 = vmatpush.msra.mxu0 0.0
    %820 = vmatpush.msra.mxu0 0.0
    %821 = vmatpush.msra.mxu0 0.0
    %822 = vmatpush.msra.mxu0 0.0
    %823 = vmatpush.msra.mxu0 0.0
    %824 = vmatpush.msra.mxu0 0.0
    %825 = vmatpush.msra.mxu0 %v807
    %826 = vmatpush.msra.mxu0 %v806
    %827 = vmatpush.msra.mxu0 %v805
    %828 = vmatpush.msra.mxu0 %v804
    %829 = vmatmul.f32.gmra.mxu0 %v811
    %v830 = vpop.f32.mrf.mxu0
    %v831 = vadd.f32 0.0, %v830
    %832 = vdwg.mxu0
    %v834 = vsel %vm101, %v125, 0
    %836 = vmatpush.msra.mxu0 0.0
    %837 = vmatpush.msra.mxu0 0.0
    %838 = vmatpush.msra.mxu0 0.0
    %839 = vmatpush.msra.mxu0 0.0
    %840 = vmatpush.msra.mxu0 0.0
    %841 = vmatpush.msra.mxu0 0.0
    %842 = vmatpush.msra.mxu0 0.0
    %843 = vmatpush.msra.mxu0 0.0
    %844 = vmatpush.msra.mxu0 0.0
    %845 = vmatpush.msra.mxu0 0.0
    %846 = vmatpush.msra.mxu0 0.0
    %847 = vmatpush.msra.mxu0 0.0
    %848 = vmatpush.msra.mxu0 %v803
    %849 = vmatpush.msra.mxu0 %v802
    %850 = vmatpush.msra.mxu0 %v801
    %851 = vmatpush.msra.mxu0 %v800
    %852 = vmatmul.f32.gmra.mxu0 %v834
    %v853 = vpop.f32.mrf.mxu0
    %v854 = vadd.f32 %v831, %v853
    %855 = vdwg.mxu0
    %v856 = vld [vmem:[%s10] sm:$0x1]
    %v858 = vperm.slane %v856, 0
    %v860 = vadd.f32 %v854, %v858
    %v861 = vtanh.pop %v860
    %v862 = vld [vmem:[#allocation8] sm:$0xff]
    %v863 = vld [vmem:[#allocation8 + $0x8] sm:$0xff]
    %v864 = vld [vmem:[#allocation8 + $0x10] sm:$0xff]
    %v865 = vld [vmem:[#allocation8 + $0x18] sm:$0xff]
    %v866 = vld [vmem:[%s12] sm:$0x1]
    %v868 = vperm.slane %v866, 0
    %v871 = vsel %vm101, %v861, 0
    %873 = vmatpush.msra.mxu0 0.0
    %874 = vmatpush.msra.mxu0 0.0
    %875 = vmatpush.msra.mxu0 0.0
    %876 = vmatpush.msra.mxu0 0.0
    %877 = vmatpush.msra.mxu0 0.0
    %878 = vmatpush.msra.mxu0 0.0
    %879 = vmatpush.msra.mxu0 0.0
    %880 = vmatpush.msra.mxu0 0.0
    %881 = vmatpush.msra.mxu0 0.0
    %882 = vmatpush.msra.mxu0 0.0
    %883 = vmatpush.msra.mxu0 0.0
    %884 = vmatpush.msra.mxu0 0.0
    %885 = vmatpush.msra.mxu0 %v865
    %886 = vmatpush.msra.mxu0 %v864
    %887 = vmatpush.msra.mxu0 %v863
    %888 = vmatpush.msra.mxu0 %v862
    %889 = vmatmul.f32.gmra.mxu0 %v871
    %v890 = vpop.f32.mrf.mxu0
    %v891 = vadd.f32 %v868, %v890
    %892 = vdwg.mxu0
    %893 = vst [vmem:[#allocation9] sm:$0xff] %v891
    // Predicated region
    $region66: #{tpu_custom_call.1} parent=1 // pred_check
      _
    $region67: #{tpu_custom_call.1} parent=1 // pred_check_branch
      %895 = sbr.rel (0) target = $region69
    $region68: #{tpu_custom_call.1} parent=1 // pred_region
      %897 = vsyncadd [#allocation5], 0
      %s899 = sshll.u32 [#allocation9], 4
      %s900 = int_to_ptr.vmem [resolvable:$true] %s899
      %s901 = sshll.u32 %s13, 4
      %s902 = int_to_ptr.hbm [resolvable:$true] %s901
      %904 = dma.vmem_to_hbm [thread:$0]  %s900, 128, %s902, [#allocation5]
    $region69: #{tpu_custom_call.1} parent=1 // pred_fallthru
      _
    // Predicated region
    $region70: #{tpu_custom_call.1} parent=1 // pred_check
      _
    $region71: #{tpu_custom_call.1} parent=1 // pred_check_branch
      %906 = sbr.rel (0) target = $region73
    $region72: #{tpu_custom_call.1} parent=1 // pred_region
      %908 = dma.done [#allocation5], 128
    $region73: #{tpu_custom_call.1} parent=1 // pred_fallthru
      _
    %909 = vsyncpa [#allocation4], 1
    %910 = vsyncpa [#allocation7], 1
    %911 = vsyncpa [#allocation5], 1

</llo_original>
